<compile_context>
chip_gen: v7x
topology: tpu7x:2x2x1
jax: 0.10.0
libtpu: 0.0.40
codegen_flags: <defaults>
</compile_context>

<pallas_src>
import functools
import math

import jax
import jax.numpy as jnp
from jax.experimental import pallas as pl
from jax.experimental.pallas import tpu as pltpu


def _mhsa_kernel(x_ref, mask_ref,
                 wq_ref, bq_ref, wk_ref, bk_ref, wv_ref, bv_ref,
                 wo_ref, bo_ref,
                 o_ref,
                 k_scratch, v_scratch,
                 *, num_heads, head_size, q_tile):
    # x_ref:    (1, S, D) bf16  -- full batch row, resident across q-tiles
    # mask_ref: (1, 1, S) f32   -- already (1 - mask) * 1e5 (additive)
    # w*_ref:   (D, D)  bf16, pre-transposed (so y = x @ W_T)
    # b*_ref:   (1, D)  f32
    # o_ref:    (1, TQ, D)
    # k_scratch / v_scratch: (H, S, Dh) bf16 VMEM, persist across q-tiles.
    H, Dh, TQ = num_heads, head_size, q_tile
    qt = pl.program_id(1)

    # --- K/V projection: once per batch row (first q-tile only). ---
    @pl.when(qt == 0)
    def _():
        xf = x_ref[0]                                         # [S, D] bf16
        S = xf.shape[0]
        k = jnp.dot(xf, wk_ref[...], preferred_element_type=jnp.float32) + bk_ref[...]
        v = jnp.dot(xf, wv_ref[...], preferred_element_type=jnp.float32) + bv_ref[...]
        # [S, D] -> [H, S, Dh], stored bf16 for the per-head MXU matmuls.
        k_scratch[...] = jnp.transpose(
            k.astype(jnp.bfloat16).reshape(S, H, Dh), (1, 0, 2))
        v_scratch[...] = jnp.transpose(
            v.astype(jnp.bfloat16).reshape(S, H, Dh), (1, 0, 2))

    # --- Q projection for this query tile (full-width D x D matmul). ---
    q_start = pl.multiple_of(qt * TQ, TQ)
    xq = x_ref[0, pl.ds(q_start, TQ), :]                      # [TQ, D] bf16
    q = jnp.dot(xq, wq_ref[...], preferred_element_type=jnp.float32) + bq_ref[...]
    q = q * (1.0 / math.sqrt(float(Dh)))                      # fold 1/sqrt(Dh) into Q (f32)
    q_h = jnp.transpose(q.astype(jnp.bfloat16).reshape(TQ, H, Dh), (1, 0, 2))  # [H, TQ, Dh]

    k_h = k_scratch[...]                                      # [H, S, Dh] bf16
    v_h = v_scratch[...]                                      # [H, S, Dh] bf16

    # --- scaled dot-product attention, batched over heads, f32 softmax. ---
    scores = jnp.einsum('hqd,hkd->hqk', q_h, k_h,
                        preferred_element_type=jnp.float32)   # [H, TQ, S]
    scores = scores - mask_ref[0]                             # broadcast [1, S] additive mask

    m = jnp.max(scores, axis=-1, keepdims=True)
    e = jnp.exp(scores - m)
    denom = jnp.sum(e, axis=-1, keepdims=True)
    probs = e * pl.reciprocal(denom, approx=True)

    # TODO(synk): dropout on attention probabilities is identity here (inference mode).
    ctx = jnp.einsum('hqk,hkd->hqd', probs.astype(jnp.bfloat16), v_h,
                     preferred_element_type=jnp.float32)      # [H, TQ, Dh]

    # --- merge heads and output projection (single full-width matmul). ---
    ctx_m = jnp.transpose(ctx.astype(jnp.bfloat16), (1, 0, 2)).reshape(TQ, H * Dh)
    out = jnp.dot(ctx_m, wo_ref[...], preferred_element_type=jnp.float32) + bo_ref[...]
    o_ref[0] = out.astype(o_ref.dtype)


def multi_head_self_attention(x, attention_mask, params, *, num_heads, head_size,
                              q_block=256):
    """x: [B, S, D] float32, attention_mask: [B, S] (1 keep / 0 mask)."""
    B, S, D = x.shape
    assert D == num_heads * head_size

    # Query-tile size: multiple of 8 dividing S, else fall back to full S.
    tq = min(q_block, S)
    if S % tq != 0 or tq % 8 != 0:
        tq = S
    n_qt = S // tq

    wq, bq, wk, bk, wv, bv, wo, bo = params
    # nn.Linear stores W as [out, in]; transpose once on the host and cast to
    # bf16 so the kernel does plain `x @ W_T` on the MXU with no in-kernel .T.
    wq_t = wq.T.astype(jnp.bfloat16)
    wk_t = wk.T.astype(jnp.bfloat16)
    wv_t = wv.T.astype(jnp.bfloat16)
    wo_t = wo.T.astype(jnp.bfloat16)
    bq = bq.reshape(1, D).astype(jnp.float32)
    bk = bk.reshape(1, D).astype(jnp.float32)
    bv = bv.reshape(1, D).astype(jnp.float32)
    bo = bo.reshape(1, D).astype(jnp.float32)

    # Additive mask kept as a single row per batch: [B, 1, S] (broadcast in-kernel).
    mask_add = ((1.0 - attention_mask.astype(jnp.float32)) * 100000.0).reshape(B, 1, S)

    # bf16 activations on the wire; accumulation stays f32 inside the kernel.
    x_bf = x.astype(jnp.bfloat16)

    kernel = functools.partial(_mhsa_kernel, num_heads=num_heads,
                               head_size=head_size, q_tile=tq)

    full_w = pl.BlockSpec((D, D), lambda b, t: (0, 0))
    full_b = pl.BlockSpec((1, D), lambda b, t: (0, 0))

    return pl.pallas_call(
        kernel,
        out_shape=jax.ShapeDtypeStruct((B, S, D), x.dtype),
        grid_spec=pltpu.PrefetchScalarGridSpec(
            num_scalar_prefetch=0,
            grid=(B, n_qt),
            in_specs=[
                pl.BlockSpec((1, S, D), lambda b, t: (b, 0, 0)),   # x (full row)
                pl.BlockSpec((1, 1, S), lambda b, t: (b, 0, 0)),   # additive mask row
                full_w, full_b,                                     # Wq^T, bq
                full_w, full_b,                                     # Wk^T, bk
                full_w, full_b,                                     # Wv^T, bv
                full_w, full_b,                                     # Wo^T, bo
            ],
            out_specs=pl.BlockSpec((1, tq, D), lambda b, t: (b, t, 0)),
            scratch_shapes=[
                pltpu.VMEM((num_heads, S, head_size), jnp.bfloat16),  # K, head-major
                pltpu.VMEM((num_heads, S, head_size), jnp.bfloat16),  # V, head-major
            ],
        ),
        compiler_params=pltpu.CompilerParams(
            # batch axis parallel (megacore / 2-TC); q-tile axis sequential so the
            # K/V scratch filled at q-tile 0 is valid for the remaining tiles.
            dimension_semantics=("parallel", "arbitrary"),
            vmem_limit_bytes=32 * 1024 * 1024,
        ),
    )(x_bf, mask_add, wq_t, bq, wk_t, bk, wv_t, bv, wo_t, bo)


def _reference(x, attention_mask, params, *, num_heads, head_size):
    """Pure-JAX f32 reference mirroring the PyTorch forward (dropout = identity)."""
    wq, bq, wk, bk, wv, bv, wo, bo = params
    B, S, D = x.shape
    q = x @ wq.T + bq
    k = x @ wk.T + bk
    v = x @ wv.T + bv
    q = q.reshape(B, S, num_heads, head_size).transpose(0, 2, 1, 3)
    k = k.reshape(B, S, num_heads, head_size).transpose(0, 2, 1, 3)
    v = v.reshape(B, S, num_heads, head_size).transpose(0, 2, 1, 3)
    scores = jnp.einsum("bhqd,bhkd->bhqk", q, k) / math.sqrt(float(head_size))
    add_mask = (1.0 - attention_mask.astype(jnp.float32)) * 100000.0
    scores = scores - add_mask[:, None, None, :]
    probs = jax.nn.softmax(scores, axis=-1)
    ctx = jnp.einsum("bhqk,bhkd->bhqd", probs, v)
    ctx = ctx.transpose(0, 2, 1, 3).reshape(B, S, D)
    return ctx @ wo.T + bo


if __name__ == "__main__":
    # Small shapes: batch=2, seq=8, heads=2, head_size=16 -> hidden D=32
    # (note: toy D=32 is below lane width 128; real BERT sizes are lane-dense).
    B, S, H, Dh = 2, 8, 2, 16
    D = H * Dh

    key = jax.random.PRNGKey(0)
    keys = jax.random.split(key, 10)

    x = jax.random.normal(keys[0], (B, S, D), dtype=jnp.float32)
    # mask: last 2 key positions of batch 1 are masked out
    attention_mask = jnp.ones((B, S), dtype=jnp.float32)
    attention_mask = attention_mask.at[1, -2:].set(0.0)

    def linear_init(kw, kb, fan_in, fan_out):
        bound = 1.0 / math.sqrt(fan_in)
        w = jax.random.uniform(kw, (fan_out, fan_in), jnp.float32, -bound, bound)
        b = jax.random.uniform(kb, (fan_out,), jnp.float32, -bound, bound)
        return w, b

    wq, bq = linear_init(keys[1], keys[2], D, D)
    wk, bk = linear_init(keys[3], keys[4], D, D)
    wv, bv = linear_init(keys[5], keys[6], D, D)
    wo, bo = linear_init(keys[7], keys[8], D, D)
    params = (wq, bq, wk, bk, wv, bv, wo, bo)

    out = multi_head_self_attention(x, attention_mask, params,
                                    num_heads=H, head_size=Dh)
    out = jax.block_until_ready(out)

    ref = _reference(x, attention_mask, params, num_heads=H, head_size=Dh)
    assert out.shape == (B, S, D)
    # bf16 matmul inputs (f32 accumulation) -> slightly looser tolerance than pure f32.
    assert jnp.allclose(out, ref, atol=2e-2, rtol=2e-2), "mismatch vs pure-JAX reference"

    print("KERNEL_OK")
</pallas_src>

<mosaic_0001>
module attributes {stable_mosaic.version = 11 : i64} {
  func.func @_mhsa_kernel(%arg0: i32, %arg1: i32, %arg2: memref<1x8x32xbf16, #tpu.memory_space<vmem>>, %arg3: memref<1x1x8xf32, #tpu.memory_space<vmem>>, %arg4: memref<32x32xbf16, #tpu.memory_space<vmem>>, %arg5: memref<1x32xf32, #tpu.memory_space<vmem>>, %arg6: memref<32x32xbf16, #tpu.memory_space<vmem>>, %arg7: memref<1x32xf32, #tpu.memory_space<vmem>>, %arg8: memref<32x32xbf16, #tpu.memory_space<vmem>>, %arg9: memref<1x32xf32, #tpu.memory_space<vmem>>, %arg10: memref<32x32xbf16, #tpu.memory_space<vmem>>, %arg11: memref<1x32xf32, #tpu.memory_space<vmem>>, %arg12: memref<1x8x32xf32, #tpu.memory_space<vmem>>, %arg13: memref<2x8x16xbf16, #tpu.memory_space<vmem>>, %arg14: memref<2x8x16xbf16, #tpu.memory_space<vmem>>) attributes {dimension_semantics = [#tpu.dimension_semantics<parallel>, #tpu.dimension_semantics<arbitrary>], iteration_bounds = array<i64: 2, 1>, scalar_prefetch = 0 : i64, scratch_operands = 2 : i64, tpu.core_type = #tpu.core_type<tc>, window_params = [{transform_indices = @transform_0, window_bounds = array<i64: 1, 8, 32>}, {transform_indices = @transform_1, window_bounds = array<i64: 1, 1, 8>}, {pipeline_mode = #tpu.pipeline_mode<synchronous>, transform_indices = @transform_2, window_bounds = array<i64: 32, 32>}, {pipeline_mode = #tpu.pipeline_mode<synchronous>, transform_indices = @transform_3, window_bounds = array<i64: 1, 32>}, {pipeline_mode = #tpu.pipeline_mode<synchronous>, transform_indices = @transform_4, window_bounds = array<i64: 32, 32>}, {pipeline_mode = #tpu.pipeline_mode<synchronous>, transform_indices = @transform_5, window_bounds = array<i64: 1, 32>}, {pipeline_mode = #tpu.pipeline_mode<synchronous>, transform_indices = @transform_6, window_bounds = array<i64: 32, 32>}, {pipeline_mode = #tpu.pipeline_mode<synchronous>, transform_indices = @transform_7, window_bounds = array<i64: 1, 32>}, {pipeline_mode = #tpu.pipeline_mode<synchronous>, transform_indices = @transform_8, window_bounds = array<i64: 32, 32>}, {pipeline_mode = #tpu.pipeline_mode<synchronous>, transform_indices = @transform_9, window_bounds = array<i64: 1, 32>}, {transform_indices = @transform_10, window_bounds = array<i64: 1, 8, 32>}]} {
    %c0_i32 = arith.constant 0 : i32
    %0 = arith.cmpi eq, %arg1, %c0_i32 : i32
    %1 = arith.extui %0 : i1 to i32
    %c0_i32_0 = arith.constant 0 : i32
    %2 = arith.cmpi ne, %1, %c0_i32_0 : i32
    scf.if %2 {
      %c0_28 = arith.constant 0 : index
      %c0_29 = arith.constant 0 : index
      %c0_30 = arith.constant 0 : index
      %49 = vector.load %arg2[%c0_28, %c0_29, %c0_30] : memref<1x8x32xbf16, #tpu.memory_space<vmem>>, vector<1x8x32xbf16>
      %50 = vector.shape_cast %49 : vector<1x8x32xbf16> to vector<8x32xbf16>
      %c0_31 = arith.constant 0 : index
      %c0_32 = arith.constant 0 : index
      %51 = vector.load %arg6[%c0_31, %c0_32] : memref<32x32xbf16, #tpu.memory_space<vmem>>, vector<32x32xbf16>
      %cst_33 = arith.constant dense<0.000000e+00> : vector<8x32xf32>
      %52 = tpu.matmul %50, %51, %cst_33 {dimension_numbers = #tpu.dot_dimension_numbers<[1], [0], [0], [1], [0, 0, 1, 1], [], []>} : vector<8x32xbf16>, vector<32x32xbf16>, vector<8x32xf32> -> vector<8x32xf32>
      %c0_34 = arith.constant 0 : index
      %c0_35 = arith.constant 0 : index
      %53 = vector.load %arg7[%c0_34, %c0_35] : memref<1x32xf32, #tpu.memory_space<vmem>>, vector<1x32xf32>
      %54 = vector.broadcast %53 : vector<1x32xf32> to vector<8x32xf32>
      %55 = arith.addf %52, %54 : vector<8x32xf32>
      %c0_36 = arith.constant 0 : index
      %c0_37 = arith.constant 0 : index
      %56 = vector.load %arg8[%c0_36, %c0_37] : memref<32x32xbf16, #tpu.memory_space<vmem>>, vector<32x32xbf16>
      %cst_38 = arith.constant dense<0.000000e+00> : vector<8x32xf32>
      %57 = tpu.matmul %50, %56, %cst_38 {dimension_numbers = #tpu.dot_dimension_numbers<[1], [0], [0], [1], [0, 0, 1, 1], [], []>} : vector<8x32xbf16>, vector<32x32xbf16>, vector<8x32xf32> -> vector<8x32xf32>
      %c0_39 = arith.constant 0 : index
      %c0_40 = arith.constant 0 : index
      %58 = vector.load %arg9[%c0_39, %c0_40] : memref<1x32xf32, #tpu.memory_space<vmem>>, vector<1x32xf32>
      %59 = vector.broadcast %58 : vector<1x32xf32> to vector<8x32xf32>
      %60 = arith.addf %57, %59 : vector<8x32xf32>
      %61 = arith.truncf %55 : vector<8x32xf32> to vector<8x32xbf16>
      %62 = vector.shape_cast %61 : vector<8x32xbf16> to vector<8x2x16xbf16>
      %63 = tpu.transpose %62, [1, 0, 2] : vector<8x2x16xbf16> -> vector<2x8x16xbf16>
      %c0_41 = arith.constant 0 : index
      %c0_42 = arith.constant 0 : index
      %c0_43 = arith.constant 0 : index
      %64 = vector.load %arg13[%c0_41, %c0_42, %c0_43] : memref<2x8x16xbf16, #tpu.memory_space<vmem>>, vector<2x8x16xbf16>
      tpu.vector_store %arg13[%c0_41, %c0_42, %c0_43], %63 {strides = array<i32>} : memref<2x8x16xbf16, #tpu.memory_space<vmem>>, vector<2x8x16xbf16>,
      %65 = arith.truncf %60 : vector<8x32xf32> to vector<8x32xbf16>
      %66 = vector.shape_cast %65 : vector<8x32xbf16> to vector<8x2x16xbf16>
      %67 = tpu.transpose %66, [1, 0, 2] : vector<8x2x16xbf16> -> vector<2x8x16xbf16>
      %c0_44 = arith.constant 0 : index
      %c0_45 = arith.constant 0 : index
      %c0_46 = arith.constant 0 : index
      %68 = vector.load %arg14[%c0_44, %c0_45, %c0_46] : memref<2x8x16xbf16, #tpu.memory_space<vmem>>, vector<2x8x16xbf16>
      tpu.vector_store %arg14[%c0_44, %c0_45, %c0_46], %67 {strides = array<i32>} : memref<2x8x16xbf16, #tpu.memory_space<vmem>>, vector<2x8x16xbf16>,
    } else {
    }
    %c8_i32 = arith.constant 8 : i32
    %3 = arith.muli %arg1, %c8_i32 : i32
    %4 = tpu.assume_multiple %3, 8 : i32
    %c0 = arith.constant 0 : index
    %5 = arith.index_cast %4 : i32 to index
    %c0_1 = arith.constant 0 : index
    %6 = vector.load %arg2[%c0, %5, %c0_1] : memref<1x8x32xbf16, #tpu.memory_space<vmem>>, vector<1x8x32xbf16>
    %7 = vector.shape_cast %6 : vector<1x8x32xbf16> to vector<8x32xbf16>
    %c0_2 = arith.constant 0 : index
    %c0_3 = arith.constant 0 : index
    %8 = vector.load %arg4[%c0_2, %c0_3] : memref<32x32xbf16, #tpu.memory_space<vmem>>, vector<32x32xbf16>
    %cst = arith.constant dense<0.000000e+00> : vector<8x32xf32>
    %9 = tpu.matmul %7, %8, %cst {dimension_numbers = #tpu.dot_dimension_numbers<[1], [0], [0], [1], [0, 0, 1, 1], [], []>} : vector<8x32xbf16>, vector<32x32xbf16>, vector<8x32xf32> -> vector<8x32xf32>
    %c0_4 = arith.constant 0 : index
    %c0_5 = arith.constant 0 : index
    %10 = vector.load %arg5[%c0_4, %c0_5] : memref<1x32xf32, #tpu.memory_space<vmem>>, vector<1x32xf32>
    %11 = vector.broadcast %10 : vector<1x32xf32> to vector<8x32xf32>
    %12 = arith.addf %9, %11 : vector<8x32xf32>
    %cst_6 = arith.constant 2.500000e-01 : f32
    %13 = vector.broadcast %cst_6 : f32 to vector<8x32xf32>
    %14 = arith.mulf %12, %13 : vector<8x32xf32>
    %15 = arith.truncf %14 : vector<8x32xf32> to vector<8x32xbf16>
    %16 = vector.shape_cast %15 : vector<8x32xbf16> to vector<8x2x16xbf16>
    %17 = tpu.transpose %16, [1, 0, 2] : vector<8x2x16xbf16> -> vector<2x8x16xbf16>
    %c0_7 = arith.constant 0 : index
    %c0_8 = arith.constant 0 : index
    %c0_9 = arith.constant 0 : index
    %18 = vector.load %arg13[%c0_7, %c0_8, %c0_9] : memref<2x8x16xbf16, #tpu.memory_space<vmem>>, vector<2x8x16xbf16>
    %c0_10 = arith.constant 0 : index
    %c0_11 = arith.constant 0 : index
    %c0_12 = arith.constant 0 : index
    %19 = vector.load %arg14[%c0_10, %c0_11, %c0_12] : memref<2x8x16xbf16, #tpu.memory_space<vmem>>, vector<2x8x16xbf16>
    "tpu.trace_start"() <{level = 10 : i32, message = "hqd,hkd->hqk"}> : () -> ()
    %cst_13 = arith.constant dense<0.000000e+00> : vector<2x8x8xf32>
    %20 = tpu.matmul %17, %18, %cst_13 {dimension_numbers = #tpu.dot_dimension_numbers<[2], [2], [1], [1], [0, 0, 0, 1, 1, 1], [0], [0]>} : vector<2x8x16xbf16>, vector<2x8x16xbf16>, vector<2x8x8xf32> -> vector<2x8x8xf32>
    "tpu.trace_stop"() : () -> ()
    %c0_14 = arith.constant 0 : index
    %c0_15 = arith.constant 0 : index
    %c0_16 = arith.constant 0 : index
    %21 = vector.load %arg3[%c0_14, %c0_15, %c0_16] : memref<1x1x8xf32, #tpu.memory_space<vmem>>, vector<1x1x8xf32>
    %22 = vector.shape_cast %21 : vector<1x1x8xf32> to vector<1x8xf32>
    %23 = vector.shape_cast %22 : vector<1x8xf32> to vector<1x1x8xf32>
    %24 = vector.broadcast %23 : vector<1x1x8xf32> to vector<2x8x8xf32>
    %25 = arith.subf %20, %24 : vector<2x8x8xf32>
    %cst_17 = arith.constant dense<0xFF800000> : vector<2x8xf32>
    %26 = vector.multi_reduction <maximumf>, %25, %cst_17 [2] : vector<2x8x8xf32> to vector<2x8xf32>
    %27 = vector.shape_cast %26 : vector<2x8xf32> to vector<2x8x1xf32>
    %28 = vector.broadcast %27 : vector<2x8x1xf32> to vector<2x8x8xf32>
    %29 = arith.subf %25, %28 : vector<2x8x8xf32>
    %30 = math.exp %29 : vector<2x8x8xf32>
    %cst_18 = arith.constant dense<0.000000e+00> : vector<2x8xf32>
    %31 = vector.multi_reduction <add>, %30, %cst_18 [2] : vector<2x8x8xf32> to vector<2x8xf32>
    %32 = vector.shape_cast %31 : vector<2x8xf32> to vector<2x8x1xf32>
    %33 = tpu.reciprocal %32 {approx = true} : vector<2x8x1xf32> -> vector<2x8x1xf32>
    %34 = vector.broadcast %33 : vector<2x8x1xf32> to vector<2x8x8xf32>
    %35 = arith.mulf %30, %34 : vector<2x8x8xf32>
    %36 = arith.truncf %35 : vector<2x8x8xf32> to vector<2x8x8xbf16>
    "tpu.trace_start"() <{level = 10 : i32, message = "hqk,hkd->hqd"}> : () -> ()
    %cst_19 = arith.constant dense<0.000000e+00> : vector<2x8x16xf32>
    %37 = tpu.matmul %36, %19, %cst_19 {dimension_numbers = #tpu.dot_dimension_numbers<[2], [1], [1], [2], [0, 0, 0, 1, 1, 2], [0], [0]>} : vector<2x8x8xbf16>, vector<2x8x16xbf16>, vector<2x8x16xf32> -> vector<2x8x16xf32>
    "tpu.trace_stop"() : () -> ()
    %38 = arith.truncf %37 : vector<2x8x16xf32> to vector<2x8x16xbf16>
    %39 = tpu.transpose %38, [1, 0, 2] : vector<2x8x16xbf16> -> vector<8x2x16xbf16>
    %40 = vector.shape_cast %39 : vector<8x2x16xbf16> to vector<8x32xbf16>
    %c0_20 = arith.constant 0 : index
    %c0_21 = arith.constant 0 : index
    %41 = vector.load %arg10[%c0_20, %c0_21] : memref<32x32xbf16, #tpu.memory_space<vmem>>, vector<32x32xbf16>
    %cst_22 = arith.constant dense<0.000000e+00> : vector<8x32xf32>
    %42 = tpu.matmul %40, %41, %cst_22 {dimension_numbers = #tpu.dot_dimension_numbers<[1], [0], [0], [1], [0, 0, 1, 1], [], []>} : vector<8x32xbf16>, vector<32x32xbf16>, vector<8x32xf32> -> vector<8x32xf32>
    %c0_23 = arith.constant 0 : index
    %c0_24 = arith.constant 0 : index
    %43 = vector.load %arg11[%c0_23, %c0_24] : memref<1x32xf32, #tpu.memory_space<vmem>>, vector<1x32xf32>
    %44 = vector.broadcast %43 : vector<1x32xf32> to vector<8x32xf32>
    %45 = arith.addf %42, %44 : vector<8x32xf32>
    %c0_25 = arith.constant 0 : index
    %c0_26 = arith.constant 0 : index
    %c0_27 = arith.constant 0 : index
    %46 = vector.load %arg12[%c0_25, %c0_26, %c0_27] : memref<1x8x32xf32, #tpu.memory_space<vmem>>, vector<1x8x32xf32>
    %47 = vector.shape_cast %46 : vector<1x8x32xf32> to vector<8x32xf32>
    %48 = vector.shape_cast %45 : vector<8x32xf32> to vector<1x8x32xf32>
    tpu.vector_store %arg12[%c0_25, %c0_26, %c0_27], %48 {strides = array<i32>} : memref<1x8x32xf32, #tpu.memory_space<vmem>>, vector<1x8x32xf32>,
    return
  }
  func.func @transform_0(%arg0: i32, %arg1: i32) -> (i32, i32, i32) {
    %c0_i32 = arith.constant 0 : i32
    %c0_i32_0 = arith.constant 0 : i32
    %c0_i32_1 = arith.constant 0 : i32
    return %arg0, %c0_i32, %c0_i32_0 : i32, i32, i32
  }
  func.func @transform_1(%arg0: i32, %arg1: i32) -> (i32, i32, i32) {
    %c0_i32 = arith.constant 0 : i32
    %c0_i32_0 = arith.constant 0 : i32
    %c0_i32_1 = arith.constant 0 : i32
    return %arg0, %c0_i32, %c0_i32_0 : i32, i32, i32
  }
  func.func @transform_2(%arg0: i32, %arg1: i32) -> (i32, i32) {
    %c0_i32 = arith.constant 0 : i32
    %c0_i32_0 = arith.constant 0 : i32
    %c0_i32_1 = arith.constant 0 : i32
    return %c0_i32, %c0_i32_0 : i32, i32
  }
  func.func @transform_3(%arg0: i32, %arg1: i32) -> (i32, i32) {
    %c0_i32 = arith.constant 0 : i32
    %c0_i32_0 = arith.constant 0 : i32
    %c0_i32_1 = arith.constant 0 : i32
    return %c0_i32, %c0_i32_0 : i32, i32
  }
  func.func @transform_4(%arg0: i32, %arg1: i32) -> (i32, i32) {
    %c0_i32 = arith.constant 0 : i32
    %c0_i32_0 = arith.constant 0 : i32
    %c0_i32_1 = arith.constant 0 : i32
    return %c0_i32, %c0_i32_0 : i32, i32
  }
  func.func @transform_5(%arg0: i32, %arg1: i32) -> (i32, i32) {
    %c0_i32 = arith.constant 0 : i32
    %c0_i32_0 = arith.constant 0 : i32
    %c0_i32_1 = arith.constant 0 : i32
    return %c0_i32, %c0_i32_0 : i32, i32
  }
  func.func @transform_6(%arg0: i32, %arg1: i32) -> (i32, i32) {
    %c0_i32 = arith.constant 0 : i32
    %c0_i32_0 = arith.constant 0 : i32
    %c0_i32_1 = arith.constant 0 : i32
    return %c0_i32, %c0_i32_0 : i32, i32
  }
  func.func @transform_7(%arg0: i32, %arg1: i32) -> (i32, i32) {
    %c0_i32 = arith.constant 0 : i32
    %c0_i32_0 = arith.constant 0 : i32
    %c0_i32_1 = arith.constant 0 : i32
    return %c0_i32, %c0_i32_0 : i32, i32
  }
  func.func @transform_8(%arg0: i32, %arg1: i32) -> (i32, i32) {
    %c0_i32 = arith.constant 0 : i32
    %c0_i32_0 = arith.constant 0 : i32
    %c0_i32_1 = arith.constant 0 : i32
    return %c0_i32, %c0_i32_0 : i32, i32
  }
  func.func @transform_9(%arg0: i32, %arg1: i32) -> (i32, i32) {
    %c0_i32 = arith.constant 0 : i32
    %c0_i32_0 = arith.constant 0 : i32
    %c0_i32_1 = arith.constant 0 : i32
    return %c0_i32, %c0_i32_0 : i32, i32
  }
  func.func @transform_10(%arg0: i32, %arg1: i32) -> (i32, i32, i32) {
    %c0_i32 = arith.constant 0 : i32
    %c0_i32_0 = arith.constant 0 : i32
    return %arg0, %arg1, %c0_i32 : i32, i32, i32
  }
}

</mosaic_0001>

<llo_original>
// kernel: tpu_custom_call.1
$region0: #{tpu_custom_call.1}
  #allocation0 [shape = 'u32[]', space=smem, size = 0x4, offset = 0x4, fixed_abs, tag = 'smem constant byte address 0x4 - core index']
  #allocation1 [shape = 'u32[144,128]{1,0:T(1,128)}', space=vmem, size = 0x12000, scoped, tag = 'internal scratch']
  #allocation2 [shape = 'bf16[2,8,16]{2,1,0:T(8,128)(2,1)}', space=vmem, size = 0x1000, scoped, tag = 'scratch operand']
  #allocation3 [shape = 'bf16[2,8,16]{2,1,0:T(8,128)(2,1)}', space=vmem, size = 0x1000, scoped, tag = 'scratch operand']
  %s0 = inlined_call_operand.hbm [shape: bf16[2,8,32], index: 0, kind: input, shape index: {}]
  %s1 = inlined_call_operand.vmem [shape: f32[2,1,8], index: 1, kind: input, shape index: {}]
  %s2 = inlined_call_operand.hbm [shape: bf16[32,32], index: 2, kind: input, shape index: {}]
  %s3 = inlined_call_operand.vmem [shape: f32[1,32], index: 3, kind: input, shape index: {}]
  %s4 = inlined_call_operand.hbm [shape: bf16[32,32], index: 4, kind: input, shape index: {}]
  %s5 = inlined_call_operand.vmem [shape: f32[1,32], index: 5, kind: input, shape index: {}]
  %s6 = inlined_call_operand.vmem [shape: bf16[32,32], index: 6, kind: input, shape index: {}]
  %s7 = inlined_call_operand.vmem [shape: f32[1,32], index: 7, kind: input, shape index: {}]
  %s8 = inlined_call_operand.hbm [shape: bf16[32,32], index: 8, kind: input, shape index: {}]
  %s9 = inlined_call_operand.vmem [shape: f32[1,32], index: 9, kind: input, shape index: {}]
  %s10 = inlined_call_operand.hbm [shape: f32[2,8,32], index: 10, kind: output, shape index: {}]
  %s11 = sld [smem:[#allocation0]]
  $region93: #{tpu_custom_call.1} parent=0
    _
  %s13 = ssub.s32 1, %s11
  %s14 = scalar_select 0, %s13, %s11
  $region1: #{tpu_custom_call.1} parent=0
    #allocation4 [shape = 'u8[4096]{0}', space=vmem, size = 0x1000, scoped, tag = 'input window, operand 0']
    #allocation5 [shape = 's32[2]{0}', space=sflag, size = 0x8, scoped, tag = 'scoped memory for tpu_custom_call.1']
    #allocation6 [shape = 's32[2]{0}', space=sflag, size = 0x8, scoped, tag = 'scoped memory for tpu_custom_call.1']
    #allocation7 [shape = 'u8[8192]{0}', space=vmem, size = 0x2000, scoped, tag = 'input window, operand 2, single buffered']
    #allocation8 [shape = 's32[1]{0}', space=sflag, size = 0x4, scoped, tag = 'scoped memory for tpu_custom_call.1']
    #allocation9 [shape = 'u8[8192]{0}', space=vmem, size = 0x2000, scoped, tag = 'input window, operand 4, single buffered']
    #allocation10 [shape = 'u8[8192]{0}', space=vmem, size = 0x2000, scoped, tag = 'input window, operand 8, single buffered']
    #allocation11 [shape = 's32[1]{0}', space=sflag, size = 0x4, scoped, tag = 'scoped memory for tpu_custom_call.1']
    #allocation12 [shape = 'u8[8192]{0}', space=vmem, size = 0x2000, scoped, tag = 'output window, operand 0']
    %15 = vsyncpa [#allocation5], 0
    %s16 = scalar_lea.sflag [#allocation5], 1
    %17 = vsyncpa %s16, 0
    %18 = vsyncpa [#allocation8], 0
    %19 = vsyncpa [#allocation11], 0
    %20 = vsyncpa [#allocation6], 0
    %s21 = scalar_lea.sflag [#allocation6], 1
    %22 = vsyncpa %s21, 0
    loop: start=0, step=1, limit=4
    $region2: #{tpu_custom_call.1} parent=1 // loop_pre_header
      _
    $region3: #{tpu_custom_call.1} parent=1 // loop_header
      %s24 = sphi 0, %s28
      %p25 = scmp.ge.s32.totalorder %s24, 4
      %s31 = sphi 0, %s43
      %s32 = sphi 0, %s39
      %s33 = sphi 0, %s31
      %s34 = sphi 0, %s32
      %s35 = sphi 0, %s33
      %s36 = sphi 0, %s34
      %s46 = sphi 0, %s48
      %s49 = sphi 0, %s46
      %s50 = sphi 0, %s49
      %s66 = sphi 0, %s50
      %s72 = sphi 0, %s74
      %s75 = sphi 0, %s72
      %s76 = sphi 0, %s75
      %s92 = sphi 0, %s76
      %s96 = sphi 0, %s96
      %s98 = sphi 0, %s96
      %s99 = sphi 0, %s98
      %s113 = sphi 0, %s99
      %s117 = sphi 0, %s117
      %s119 = sphi 0, %s117
      %s120 = sphi 0, %s119
      %s134 = sphi 0, %s120
      %s138 = sphi 0, %s138
      %s140 = sphi 0, %s138
      %s141 = sphi 0, %s140
      %s155 = sphi 0, %s141
      %s159 = sphi 0, %s159
      %s161 = sphi 0, %s159
      %s162 = sphi 0, %s161
      %s176 = sphi 0, %s162
      %s180 = sphi 0, %s180
      %s182 = sphi 0, %s180
      %s183 = sphi 0, %s182
      %s197 = sphi 0, %s183
      %s201 = sphi 0, %s201
      %s203 = sphi 0, %s201
      %s204 = sphi 0, %s203
      %s218 = sphi 0, %s204
      %s222 = sphi 0, %s222
      %s224 = sphi 0, %s222
      %s225 = sphi 0, %s224
      %s239 = sphi 0, %s225
      %s243 = sphi 0, %s243
      %s245 = sphi 0, %s243
      %s246 = sphi 0, %s245
      %s260 = sphi 0, %s246
      %s268 = sphi 0, %s270
      %s271 = sphi 0, %s268
      %s272 = sphi 0, %s271
      %s288 = sphi 0, %s272
    $region4: #{tpu_custom_call.1} parent=1 // loop_header_branch
      %27 = sbr.rel (%p25) target = $region8
    $region5: #{tpu_custom_call.1} parent=1 // loop_body
      %s29 = ssub.s32 %s24, 1
      %s30 = ssub.s32 %s24, 2
      %s37 = sadd.s32 1, %s32
      %p38 = scmp.ge.s32.totalorder %s37, 1
      %s39 = scalar_select %p38, 0, %s37
      %s40 = sadd.s32 1, %s31
      %s41 = scalar_select %p38, %s40, %s31
      %p42 = scmp.ge.s32.totalorder %s41, 2
      %s43 = scalar_select %p42, 0, %s41
      %s44 = ssub.s32 %s31, %s43
      %p45 = scmp.eq.s32.totalorder %s44, 0
      %s47 = sadd.s32 %s46, 1
      %s48 = scalar_select %p45, %s46, %s47
      %p51 = pneg %p45
      %p52 = scmp.eq.s32.totalorder %s24, 1
      %p53 = por %p51, %p52
      %p54 = scmp.ne.s32.totalorder %s46, %s49
      %p55 = scmp.eq.s32.totalorder %s24, 0
      %p56 = por %p54, %p55
      %p57 = scmp.ne.s32.totalorder %s46, %s49
      %p58 = scmp.eq.s32.totalorder %s29, 1
      %p59 = por %p57, %p58
      %p60 = scmp.ne.s32.totalorder %s49, %s50
      %p61 = scmp.eq.s32.totalorder %s29, 0
      %p62 = por %p60, %p61
      %p63 = scmp.ne.s32.totalorder %s49, %s50
      %p64 = scmp.eq.s32.totalorder %s30, 1
      %p65 = por %p63, %p64
      %p67 = scmp.ne.s32.totalorder %s50, %s66
      %p68 = scmp.eq.s32.totalorder %s30, 0
      %p69 = por %p67, %p68
      %s70 = ssub.s32 %s31, %s43
      %p71 = scmp.eq.s32.totalorder %s70, 0
      %s73 = sadd.s32 %s72, 1
      %s74 = scalar_select %p71, %s72, %s73
      %p77 = pneg %p71
      %p78 = scmp.eq.s32.totalorder %s24, 1
      %p79 = por %p77, %p78
      %p80 = scmp.ne.s32.totalorder %s72, %s75
      %p81 = scmp.eq.s32.totalorder %s24, 0
      %p82 = por %p80, %p81
      %p83 = scmp.ne.s32.totalorder %s72, %s75
      %p84 = scmp.eq.s32.totalorder %s29, 1
      %p85 = por %p83, %p84
      %p86 = scmp.ne.s32.totalorder %s75, %s76
      %p87 = scmp.eq.s32.totalorder %s29, 0
      %p88 = por %p86, %p87
      %p89 = scmp.ne.s32.totalorder %s75, %s76
      %p90 = scmp.eq.s32.totalorder %s30, 1
      %p91 = por %p89, %p90
      %p93 = scmp.ne.s32.totalorder %s76, %s92
      %p94 = scmp.eq.s32.totalorder %s30, 0
      %p95 = por %p93, %p94
      %s97 = sadd.s32 %s96, 1
      %p100 = scmp.eq.s32.totalorder %s24, 1
      %p101 = scmp.ne.s32.totalorder %s96, %s98
      %p102 = scmp.eq.s32.totalorder %s24, 0
      %p103 = por %p101, %p102
      %p104 = scmp.ne.s32.totalorder %s96, %s98
      %p105 = scmp.eq.s32.totalorder %s29, 1
      %p106 = por %p104, %p105
      %p107 = scmp.ne.s32.totalorder %s98, %s99
      %p108 = scmp.eq.s32.totalorder %s29, 0
      %p109 = por %p107, %p108
      %p110 = scmp.ne.s32.totalorder %s98, %s99
      %p111 = scmp.eq.s32.totalorder %s30, 1
      %p112 = por %p110, %p111
      %p114 = scmp.ne.s32.totalorder %s99, %s113
      %p115 = scmp.eq.s32.totalorder %s30, 0
      %p116 = por %p114, %p115
      %s118 = sadd.s32 %s117, 1
      %p121 = scmp.eq.s32.totalorder %s24, 1
      %p122 = scmp.ne.s32.totalorder %s117, %s119
      %p123 = scmp.eq.s32.totalorder %s24, 0
      %p124 = por %p122, %p123
      %p125 = scmp.ne.s32.totalorder %s117, %s119
      %p126 = scmp.eq.s32.totalorder %s29, 1
      %p127 = por %p125, %p126
      %p128 = scmp.ne.s32.totalorder %s119, %s120
      %p129 = scmp.eq.s32.totalorder %s29, 0
      %p130 = por %p128, %p129
      %p131 = scmp.ne.s32.totalorder %s119, %s120
      %p132 = scmp.eq.s32.totalorder %s30, 1
      %p133 = por %p131, %p132
      %p135 = scmp.ne.s32.totalorder %s120, %s134
      %p136 = scmp.eq.s32.totalorder %s30, 0
      %p137 = por %p135, %p136
      %s139 = sadd.s32 %s138, 1
      %p142 = scmp.eq.s32.totalorder %s24, 1
      %p143 = scmp.ne.s32.totalorder %s138, %s140
      %p144 = scmp.eq.s32.totalorder %s24, 0
      %p145 = por %p143, %p144
      %p146 = scmp.ne.s32.totalorder %s138, %s140
      %p147 = scmp.eq.s32.totalorder %s29, 1
      %p148 = por %p146, %p147
      %p149 = scmp.ne.s32.totalorder %s140, %s141
      %p150 = scmp.eq.s32.totalorder %s29, 0
      %p151 = por %p149, %p150
      %p152 = scmp.ne.s32.totalorder %s140, %s141
      %p153 = scmp.eq.s32.totalorder %s30, 1
      %p154 = por %p152, %p153
      %p156 = scmp.ne.s32.totalorder %s141, %s155
      %p157 = scmp.eq.s32.totalorder %s30, 0
      %p158 = por %p156, %p157
      %s160 = sadd.s32 %s159, 1
      %p163 = scmp.eq.s32.totalorder %s24, 1
      %p164 = scmp.ne.s32.totalorder %s159, %s161
      %p165 = scmp.eq.s32.totalorder %s24, 0
      %p166 = por %p164, %p165
      %p167 = scmp.ne.s32.totalorder %s159, %s161
      %p168 = scmp.eq.s32.totalorder %s29, 1
      %p169 = por %p167, %p168
      %p170 = scmp.ne.s32.totalorder %s161, %s162
      %p171 = scmp.eq.s32.totalorder %s29, 0
      %p172 = por %p170, %p171
      %p173 = scmp.ne.s32.totalorder %s161, %s162
      %p174 = scmp.eq.s32.totalorder %s30, 1
      %p175 = por %p173, %p174
      %p177 = scmp.ne.s32.totalorder %s162, %s176
      %p178 = scmp.eq.s32.totalorder %s30, 0
      %p179 = por %p177, %p178
      %s181 = sadd.s32 %s180, 1
      %p184 = scmp.eq.s32.totalorder %s24, 1
      %p185 = scmp.ne.s32.totalorder %s180, %s182
      %p186 = scmp.eq.s32.totalorder %s24, 0
      %p187 = por %p185, %p186
      %p188 = scmp.ne.s32.totalorder %s180, %s182
      %p189 = scmp.eq.s32.totalorder %s29, 1
      %p190 = por %p188, %p189
      %p191 = scmp.ne.s32.totalorder %s182, %s183
      %p192 = scmp.eq.s32.totalorder %s29, 0
      %p193 = por %p191, %p192
      %p194 = scmp.ne.s32.totalorder %s182, %s183
      %p195 = scmp.eq.s32.totalorder %s30, 1
      %p196 = por %p194, %p195
      %p198 = scmp.ne.s32.totalorder %s183, %s197
      %p199 = scmp.eq.s32.totalorder %s30, 0
      %p200 = por %p198, %p199
      %s202 = sadd.s32 %s201, 1
      %p205 = scmp.eq.s32.totalorder %s24, 1
      %p206 = scmp.ne.s32.totalorder %s201, %s203
      %p207 = scmp.eq.s32.totalorder %s24, 0
      %p208 = por %p206, %p207
      %p209 = scmp.ne.s32.totalorder %s201, %s203
      %p210 = scmp.eq.s32.totalorder %s29, 1
      %p211 = por %p209, %p210
      %p212 = scmp.ne.s32.totalorder %s203, %s204
      %p213 = scmp.eq.s32.totalorder %s29, 0
      %p214 = por %p212, %p213
      %p215 = scmp.ne.s32.totalorder %s203, %s204
      %p216 = scmp.eq.s32.totalorder %s30, 1
      %p217 = por %p215, %p216
      %p219 = scmp.ne.s32.totalorder %s204, %s218
      %p220 = scmp.eq.s32.totalorder %s30, 0
      %p221 = por %p219, %p220
      %s223 = sadd.s32 %s222, 1
      %p226 = scmp.eq.s32.totalorder %s24, 1
      %p227 = scmp.ne.s32.totalorder %s222, %s224
      %p228 = scmp.eq.s32.totalorder %s24, 0
      %p229 = por %p227, %p228
      %p230 = scmp.ne.s32.totalorder %s222, %s224
      %p231 = scmp.eq.s32.totalorder %s29, 1
      %p232 = por %p230, %p231
      %p233 = scmp.ne.s32.totalorder %s224, %s225
      %p234 = scmp.eq.s32.totalorder %s29, 0
      %p235 = por %p233, %p234
      %p236 = scmp.ne.s32.totalorder %s224, %s225
      %p237 = scmp.eq.s32.totalorder %s30, 1
      %p238 = por %p236, %p237
      %p240 = scmp.ne.s32.totalorder %s225, %s239
      %p241 = scmp.eq.s32.totalorder %s30, 0
      %p242 = por %p240, %p241
      %s244 = sadd.s32 %s243, 1
      %p247 = scmp.eq.s32.totalorder %s24, 1
      %p248 = scmp.ne.s32.totalorder %s243, %s245
      %p249 = scmp.eq.s32.totalorder %s24, 0
      %p250 = por %p248, %p249
      %p251 = scmp.ne.s32.totalorder %s243, %s245
      %p252 = scmp.eq.s32.totalorder %s29, 1
      %p253 = por %p251, %p252
      %p254 = scmp.ne.s32.totalorder %s245, %s246
      %p255 = scmp.eq.s32.totalorder %s29, 0
      %p256 = por %p254, %p255
      %p257 = scmp.ne.s32.totalorder %s245, %s246
      %p258 = scmp.eq.s32.totalorder %s30, 1
      %p259 = por %p257, %p258
      %p261 = scmp.ne.s32.totalorder %s246, %s260
      %p262 = scmp.eq.s32.totalorder %s30, 0
      %p263 = por %p261, %p262
      %s264 = ssub.s32 %s31, %s43
      %s265 = ssub.s32 %s32, %s39
      %s266 = sor.u32 %s264, %s265
      %p267 = scmp.eq.s32.totalorder %s266, 0
      %s269 = sadd.s32 %s268, 1
      %s270 = scalar_select %p267, %s268, %s269
      %p273 = pneg %p267
      %p274 = scmp.eq.s32.totalorder %s24, 1
      %p275 = por %p273, %p274
      %p276 = scmp.ne.s32.totalorder %s268, %s271
      %p277 = scmp.eq.s32.totalorder %s24, 0
      %p278 = por %p276, %p277
      %p279 = scmp.ne.s32.totalorder %s268, %s271
      %p280 = scmp.eq.s32.totalorder %s29, 1
      %p281 = por %p279, %p280
      %p282 = scmp.ne.s32.totalorder %s271, %s272
      %p283 = scmp.eq.s32.totalorder %s29, 0
      %p284 = por %p282, %p283
      %p285 = scmp.ne.s32.totalorder %s271, %s272
      %p286 = scmp.eq.s32.totalorder %s30, 1
      %p287 = por %p285, %p286
      %p289 = scmp.ne.s32.totalorder %s272, %s288
      %p290 = scmp.eq.s32.totalorder %s30, 0
      %p291 = por %p289, %p290
      %p292 = scmp.le.s32.totalorder 1, %s24
      %p293 = scmp.lt.s32.totalorder %s24, 3
      %p294 = pnand %p292, %p293
      %p295 = pneg %p294
      // Predicated region
      $region9: #{tpu_custom_call.1} parent=5 // pred_check
        _
      $region10: #{tpu_custom_call.1} parent=5 // pred_check_branch
        %297 = sbr.rel (%p294) target = $region12
      $region11: #{tpu_custom_call.1} parent=5 // pred_region
        %s298 = ssub.s32 %s24, 1
        // Predicated region
        $region13: #{tpu_custom_call.1} parent=11 // pred_check
          %p299 = pneg %p109
        $region14: #{tpu_custom_call.1} parent=11 // pred_check_branch
          %301 = sbr.rel (%p299) target = $region16
        $region15: #{tpu_custom_call.1} parent=11 // pred_region
          %s303 = ssub.s32 256, 256
          %304 = vsyncadd [#allocation8], %s303
          %s305 = sshll.u32 [#allocation7], 4
          %s306 = int_to_ptr.vmem [resolvable:$true] %s305
          %311 = dma.hbm_to_vmem [thread:$0]  %s2, 256, %s306, [#allocation8], 64, 64, 4
        $region16: #{tpu_custom_call.1} parent=11 // pred_fallthru
          _
        // Predicated region
        $region17: #{tpu_custom_call.1} parent=11 // pred_check
          %p312 = pneg %p130
        $region18: #{tpu_custom_call.1} parent=11 // pred_check_branch
          %314 = sbr.rel (%p312) target = $region20
        $region19: #{tpu_custom_call.1} parent=11 // pred_region
          _
        $region20: #{tpu_custom_call.1} parent=11 // pred_fallthru
          _
        // Predicated region
        $region21: #{tpu_custom_call.1} parent=11 // pred_check
          %p315 = pneg %p151
        $region22: #{tpu_custom_call.1} parent=11 // pred_check_branch
          %317 = sbr.rel (%p315) target = $region24
        $region23: #{tpu_custom_call.1} parent=11 // pred_region
          %s319 = ssub.s32 256, 256
          %320 = vsyncadd [#allocation8], %s319
          %s321 = sshll.u32 [#allocation9], 4
          %s322 = int_to_ptr.vmem [resolvable:$true] %s321
          %327 = dma.hbm_to_vmem [thread:$0]  %s4, 256, %s322, [#allocation8], 64, 64, 4
        $region24: #{tpu_custom_call.1} parent=11 // pred_fallthru
          _
        // Predicated region
        $region25: #{tpu_custom_call.1} parent=11 // pred_check
          %p328 = pneg %p172
        $region26: #{tpu_custom_call.1} parent=11 // pred_check_branch
          %330 = sbr.rel (%p328) target = $region28
        $region27: #{tpu_custom_call.1} parent=11 // pred_region
          _
        $region28: #{tpu_custom_call.1} parent=11 // pred_fallthru
          _
        // Predicated region
        $region29: #{tpu_custom_call.1} parent=11 // pred_check
          %p331 = pneg %p193
        $region30: #{tpu_custom_call.1} parent=11 // pred_check_branch
          %333 = sbr.rel (%p331) target = $region32
        $region31: #{tpu_custom_call.1} parent=11 // pred_region
          _
        $region32: #{tpu_custom_call.1} parent=11 // pred_fallthru
          _
        // Predicated region
        $region33: #{tpu_custom_call.1} parent=11 // pred_check
          %p334 = pneg %p214
        $region34: #{tpu_custom_call.1} parent=11 // pred_check_branch
          %336 = sbr.rel (%p334) target = $region36
        $region35: #{tpu_custom_call.1} parent=11 // pred_region
          _
        $region36: #{tpu_custom_call.1} parent=11 // pred_fallthru
          _
        // Predicated region
        $region37: #{tpu_custom_call.1} parent=11 // pred_check
          %p337 = pneg %p235
        $region38: #{tpu_custom_call.1} parent=11 // pred_check_branch
          %339 = sbr.rel (%p337) target = $region40
        $region39: #{tpu_custom_call.1} parent=11 // pred_region
          %s341 = ssub.s32 256, 256
          %342 = vsyncadd [#allocation11], %s341
          %s343 = sshll.u32 [#allocation10], 4
          %s344 = int_to_ptr.vmem [resolvable:$true] %s343
          %349 = dma.hbm_to_vmem [thread:$0]  %s8, 256, %s344, [#allocation11], 64, 64, 4
        $region40: #{tpu_custom_call.1} parent=11 // pred_fallthru
          _
        // Predicated region
        $region41: #{tpu_custom_call.1} parent=11 // pred_check
          %p350 = pneg %p256
        $region42: #{tpu_custom_call.1} parent=11 // pred_check_branch
          %352 = sbr.rel (%p350) target = $region44
        $region43: #{tpu_custom_call.1} parent=11 // pred_region
          _
        $region44: #{tpu_custom_call.1} parent=11 // pred_fallthru
          _
      $region12: #{tpu_custom_call.1} parent=5 // pred_fallthru
        _
      %p353 = scmp.lt.s32.totalorder %s24, 2
      // Predicated region
      $region45: #{tpu_custom_call.1} parent=5 // pred_check
        %p354 = pneg %p353
      $region46: #{tpu_custom_call.1} parent=5 // pred_check_branch
        %356 = sbr.rel (%p354) target = $region48
      $region47: #{tpu_custom_call.1} parent=5 // pred_region
        // Predicated region
        $region49: #{tpu_custom_call.1} parent=47 // pred_check
          %p357 = pneg %p56
        $region50: #{tpu_custom_call.1} parent=47 // pred_check_branch
          %359 = sbr.rel (%p357) target = $region52
        $region51: #{tpu_custom_call.1} parent=47 // pred_region
          %s360 = sand.u32 %s46, 1
          %s361 = scalar_lea.sflag [#allocation5], %s360
          %s362 = sand.u32 %s46, 1
          %s363 = smul.addr %s362, 4
          %s364 = scalar_lea.vmem [#allocation4], %s363
          %s366 = ssub.s32 64, 64
          %367 = vsyncadd %s361, %s366
          %s368 = smul.addr %s31, 64
          %s369 = scalar_lea.hbm %s0, %s368
          %s371 = sshll.u32 %s364, 4
          %s372 = int_to_ptr.vmem [resolvable:$true] %s371
          %374 = dma.hbm_to_vmem [thread:$0]  %s369, 64, %s372, %s361
        $region52: #{tpu_custom_call.1} parent=47 // pred_fallthru
          _
        // Predicated region
        $region53: #{tpu_custom_call.1} parent=47 // pred_check
          %p375 = pneg %p82
        $region54: #{tpu_custom_call.1} parent=47 // pred_check_branch
          %377 = sbr.rel (%p375) target = $region56
        $region55: #{tpu_custom_call.1} parent=47 // pred_region
          %p378 = scmp.lt.s32.totalorder %s31, 1
          %s379 = scalar_select %p378, %s31, 1
          %s380 = scalar_lea.vmem %s1, %s379
        $region56: #{tpu_custom_call.1} parent=47 // pred_fallthru
          _
      $region48: #{tpu_custom_call.1} parent=5 // pred_fallthru
        _
      %p381 = scmp.le.s32.totalorder 1, %s24
      %p382 = scmp.lt.s32.totalorder %s24, 3
      %p383 = pnand %p381, %p382
      %p384 = pneg %p383
      // Predicated region
      $region57: #{tpu_custom_call.1} parent=5 // pred_check
        _
      $region58: #{tpu_custom_call.1} parent=5 // pred_check_branch
        %386 = sbr.rel (%p383) target = $region60
      $region59: #{tpu_custom_call.1} parent=5 // pred_region
        %s387 = ssub.s32 %s24, 1
        %s388 = sand.u32 %s49, 1
        %s389 = scalar_lea.sflag [#allocation5], %s388
        %s390 = sand.u32 %s49, 1
        %s391 = smul.addr %s390, 4
        %s392 = scalar_lea.vmem [#allocation4], %s391
        // Predicated region
        $region61: #{tpu_custom_call.1} parent=59 // pred_check
          %p393 = pneg %p62
        $region62: #{tpu_custom_call.1} parent=59 // pred_check_branch
          %395 = sbr.rel (%p393) target = $region64
        $region63: #{tpu_custom_call.1} parent=59 // pred_region
          %396 = dma.done %s389, 64
        $region64: #{tpu_custom_call.1} parent=59 // pred_fallthru
          _
        // Predicated region
        $region65: #{tpu_custom_call.1} parent=59 // pred_check
          %p397 = pneg %p109
        $region66: #{tpu_custom_call.1} parent=59 // pred_check_branch
          %399 = sbr.rel (%p397) target = $region68
        $region67: #{tpu_custom_call.1} parent=59 // pred_region
          %400 = dma.done [#allocation8], 256
        $region68: #{tpu_custom_call.1} parent=59 // pred_fallthru
          _
        // Predicated region
        $region69: #{tpu_custom_call.1} parent=59 // pred_check
          %p401 = pneg %p151
        $region70: #{tpu_custom_call.1} parent=59 // pred_check_branch
          %403 = sbr.rel (%p401) target = $region72
        $region71: #{tpu_custom_call.1} parent=59 // pred_region
          %404 = dma.done [#allocation8], 256
        $region72: #{tpu_custom_call.1} parent=59 // pred_fallthru
          _
        // Predicated region
        $region73: #{tpu_custom_call.1} parent=59 // pred_check
          %p405 = pneg %p235
        $region74: #{tpu_custom_call.1} parent=59 // pred_check_branch
          %407 = sbr.rel (%p405) target = $region76
        $region75: #{tpu_custom_call.1} parent=59 // pred_region
          %408 = dma.done [#allocation11], 256
        $region76: #{tpu_custom_call.1} parent=59 // pred_fallthru
          _
        %s409 = sand.u32 %s49, 1
        %s410 = scalar_lea.sflag [#allocation5], %s409
        %s411 = sand.u32 %s49, 1
        %s412 = smul.addr %s411, 4
        %s413 = scalar_lea.vmem [#allocation4], %s412
        %p414 = pneg %p62
        %p415 = pneg %p59
        %p416 = scmp.lt.s32.totalorder %s33, 1
        %s417 = scalar_select %p416, %s33, 1
        %s418 = scalar_lea.vmem %s1, %s417
        %p419 = pneg %p88
        %p420 = pneg %p85
        %p421 = pneg %p109
        %p422 = pneg %p106
        %p423 = pneg %p130
        %p424 = pneg %p127
        %p425 = pneg %p151
        %p426 = pneg %p148
        %p427 = pneg %p172
        %p428 = pneg %p169
        %p429 = pneg %p193
        %p430 = pneg %p190
        %p431 = pneg %p214
        %p432 = pneg %p211
        %p433 = pneg %p235
        %p434 = pneg %p232
        %p435 = pneg %p256
        %p436 = pneg %p253
        %p437 = pneg %p284
        %p438 = pneg %p281
        %s439 = sand.u32 %s271, 1
        %s440 = scalar_lea.sflag [#allocation6], %s439
        %s441 = sand.u32 %s271, 1
        %s442 = smul.addr %s441, 8
        %s443 = scalar_lea.vmem [#allocation12], %s442
        %p444 = scmp.lt.s32.totalorder %s33, 1
        %s445 = scalar_select %p444, %s33, 1
        %s446 = scalar_lea.vmem %s1, %s445
        %p448 = scmp.eq.s32.totalorder %s34, 0
        // Predicated region
        $region77: #{tpu_custom_call.1} parent=59 // pred_check
          %p449 = pneg %p448
        $region78: #{tpu_custom_call.1} parent=59 // pred_check_branch
          %451 = sbr.rel (%p449) target = $region80
        $region79: #{tpu_custom_call.1} parent=59 // pred_region
          %v452 = vld [vmem:[%s392] sm:$0xf]
          %v453 = vld [vmem:[#allocation9] sm:$0xf]
          %v454 = vld [vmem:[#allocation9 + $0x4] sm:$0xf]
          %v455 = vld [vmem:[#allocation9 + $0x8] sm:$0xf]
          %v456 = vld [vmem:[#allocation9 + $0xc] sm:$0xf]
          %v457 = vld [vmem:[%s5] sm:$0x1]
          %v459 = vlaneseq
          %v460 = vshrl.u32 %v459, 7
          %v461 = vsub.s32 0, %v460
          %v462 = vrot.slane %v457, %v461
          %v468 = vunpack.c.l.b16 %v453
          %v469 = vunpack.c.l.b16 %v454
          %v470 = vunpack.c.l.b16 %v455
          %v471 = vunpack.c.l.b16 %v456
          %v472 = vpack.c.b16 %v469, %v468
          %v473 = vpack.c.b16 %v471, %v470
          %vm476 = vcmask 261120
          %v478 = vsel %vm476, %v452, 0
          %480 = vmatprep.subr.bf16.mxu0 0
          %481 = vmatpush1.bf16.msra.mxu0 %v472
          %482 = vmatprep.subr.bf16.mxu0 0
          %483 = vmatpush1.bf16.msra.mxu0 %v473
          %484 = vmatprep.subr.bf16.mxu0 0
          %485 = vmatpush1.bf16.msra.mxu0 0
          %486 = vmatprep.subr.bf16.mxu0 0
          %487 = vmatpush1.bf16.msra.mxu0 0
          %488 = vmatprep.subr.bf16.mxu0 0
          %489 = vmatpush1.bf16.msra.mxu0 0
          %490 = vmatprep.subr.bf16.mxu0 0
          %491 = vmatpush1.bf16.msra.mxu0 0
          %492 = vmatprep.subr.bf16.mxu0 0
          %493 = vmatpush1.bf16.msra.mxu0 0
          %494 = vmatprep.subr.bf16.mxu0 0
          %495 = vmatpush1.bf16.msra.mxu0 0
          %496 = vmatprep.subr.bf16.mxu0 0
          %497 = vmatpush1.bf16.msra.mxu0 0
          %498 = vmatprep.subr.bf16.mxu0 0
          %499 = vmatpush1.bf16.msra.mxu0 0
          %500 = vmatprep.subr.bf16.mxu0 0
          %501 = vmatpush1.bf16.msra.mxu0 0
          %502 = vmatprep.subr.bf16.mxu0 0
          %503 = vmatpush1.bf16.msra.mxu0 0
          %504 = vmatprep.subr.bf16.mxu0 0
          %505 = vmatpush1.bf16.msra.mxu0 0
          %506 = vmatprep.subr.bf16.mxu0 0
          %507 = vmatpush1.bf16.msra.mxu0 0
          %508 = vmatprep.subr.bf16.mxu0 0
          %509 = vmatpush1.bf16.msra.mxu0 0
          %510 = vmatprep.subr.bf16.mxu0 0
          %511 = vmatpush1.bf16.msra.mxu0 0
          %512 = vmatprep.mubr.bf16.mxu0 0
          %513 = vmatmul.mubr.bf16.gmra.mrb[0].mxu0 %v478
          %v514 = vpop.f32.mrb[0].mxu0
          %v515 = vadd.f32 %v462, %v514
          %v516 = vpop.f32.mrb[0].mxu0
          %v517 = vpop.f32.mrb[0].mxu0
          %v518 = vpop.f32.mrb[0].mxu0
          %519 = vdwg.mxu0
          %v520 = vld [vmem:[%s6] sm:$0xf]
          %v521 = vld [vmem:[%s6 + $0x4] sm:$0xf]
          %v522 = vld [vmem:[%s6 + $0x8] sm:$0xf]
          %v523 = vld [vmem:[%s6 + $0xc] sm:$0xf]
          %v524 = vld [vmem:[%s7] sm:$0x1]
          %v526 = vlaneseq
          %v527 = vshrl.u32 %v526, 7
          %v528 = vsub.s32 0, %v527
          %v529 = vrot.slane %v524, %v528
          %v535 = vunpack.c.l.b16 %v520
          %v536 = vunpack.c.l.b16 %v521
          %v537 = vunpack.c.l.b16 %v522
          %v538 = vunpack.c.l.b16 %v523
          %v539 = vpack.c.b16 %v536, %v535
          %v540 = vpack.c.b16 %v538, %v537
          %543 = vmatprep.subr.bf16.mxu0 0
          %544 = vmatpush1.bf16.msra.mxu0 %v539
          %545 = vmatprep.subr.bf16.mxu0 0
          %546 = vmatpush1.bf16.msra.mxu0 %v540
          %547 = vmatprep.subr.bf16.mxu0 0
          %548 = vmatpush1.bf16.msra.mxu0 0
          %549 = vmatprep.subr.bf16.mxu0 0
          %550 = vmatpush1.bf16.msra.mxu0 0
          %551 = vmatprep.subr.bf16.mxu0 0
          %552 = vmatpush1.bf16.msra.mxu0 0
          %553 = vmatprep.subr.bf16.mxu0 0
          %554 = vmatpush1.bf16.msra.mxu0 0
          %555 = vmatprep.subr.bf16.mxu0 0
          %556 = vmatpush1.bf16.msra.mxu0 0
          %557 = vmatprep.subr.bf16.mxu0 0
          %558 = vmatpush1.bf16.msra.mxu0 0
          %559 = vmatprep.subr.bf16.mxu0 0
          %560 = vmatpush1.bf16.msra.mxu0 0
          %561 = vmatprep.subr.bf16.mxu0 0
          %562 = vmatpush1.bf16.msra.mxu0 0
          %563 = vmatprep.subr.bf16.mxu0 0
          %564 = vmatpush1.bf16.msra.mxu0 0
          %565 = vmatprep.subr.bf16.mxu0 0
          %566 = vmatpush1.bf16.msra.mxu0 0
          %567 = vmatprep.subr.bf16.mxu0 0
          %568 = vmatpush1.bf16.msra.mxu0 0
          %569 = vmatprep.subr.bf16.mxu0 0
          %570 = vmatpush1.bf16.msra.mxu0 0
          %571 = vmatprep.subr.bf16.mxu0 0
          %572 = vmatpush1.bf16.msra.mxu0 0
          %573 = vmatprep.subr.bf16.mxu0 0
          %574 = vmatpush1.bf16.msra.mxu0 0
          %575 = vmatprep.mubr.bf16.mxu0 0
          %576 = vmatmul.mubr.bf16.gmra.mrb[0].mxu0 %v478
          %v577 = vpop.f32.mrb[0].mxu0
          %v578 = vadd.f32 %v529, %v577
          %v579 = vpop.f32.mrb[0].mxu0
          %v580 = vpop.f32.mrb[0].mxu0
          %v581 = vpop.f32.mrb[0].mxu0
          %582 = vdwg.mxu0
          %v583 = vpack.c.bf16 %v515, %v515
          %585 = vrot.lane.b32.xlu0 %v583, 112
          %v586 = vpop.permute.xlu0 %585
          %v588 = vunpack.c.l.s4 1983009808
          %v589 = vunpack.c.0.s8 %v588
          %v590 = vlaneseq
          %v591 = vshrl.u32 %v590, 7
          %v592 = vsub.s32 %v589, %v591
          %v593 = vrot.slane %v583, %v592
          %v594 = vcombine.high %v593, 0
          %v596 = vunpack.c.l.s4 1934713408
          %v597 = vunpack.c.0.s8 %v596
          %v598 = vlaneseq
          %v599 = vshrl.u32 %v598, 7
          %v600 = vsub.s32 %v597, %v599
          %v601 = vrot.slane %v593, %v600
          %v603 = vunpack.c.l.s4 1934713408
          %v604 = vunpack.c.0.s8 %v603
          %v605 = vlaneseq
          %v606 = vshrl.u32 %v605, 7
          %v607 = vsub.s32 %v604, %v606
          %v608 = vrot.slane %v594, %v607
          %v609 = vcombine.high %v601, 0
          %v610 = vcombine.high %v608, 0
          %v613 = vunpack.c.l.s4 1983009808
          %v614 = vunpack.c.0.s8 %v613
          %v615 = vlaneseq
          %v616 = vshrl.u32 %v615, 7
          %v617 = vsub.s32 %v614, %v616
          %v618 = vrot.slane %v586, %v617
          %v619 = vcombine.high %v618, 0
          %v621 = vunpack.c.l.s4 1934713408
          %v622 = vunpack.c.0.s8 %v621
          %v623 = vlaneseq
          %v624 = vshrl.u32 %v623, 7
          %v625 = vsub.s32 %v622, %v624
          %v626 = vrot.slane %v618, %v625
          %v628 = vunpack.c.l.s4 1934713408
          %v629 = vunpack.c.0.s8 %v628
          %v630 = vlaneseq
          %v631 = vshrl.u32 %v630, 7
          %v632 = vsub.s32 %v629, %v631
          %v633 = vrot.slane %v619, %v632
          %v634 = vcombine.high %v626, 0
          %v635 = vcombine.high %v633, 0
          %v638 = vpack.i.b16 %v626, %v601
          %v640 = vshrl.u32 %v601, 16
          %v641 = vshrl.u32 %v626, 16
          %v642 = vpack.i.b16 %v641, %v640
          %v646 = vpack.i.b16 %v634, %v609
          %v648 = vshrl.u32 %v609, 16
          %v649 = vshrl.u32 %v634, 16
          %v650 = vpack.i.b16 %v649, %v648
          %v654 = vpack.i.b16 %v633, %v608
          %v656 = vshrl.u32 %v608, 16
          %v657 = vshrl.u32 %v633, 16
          %v658 = vpack.i.b16 %v657, %v656
          %v662 = vpack.i.b16 %v635, %v610
          %v664 = vshrl.u32 %v610, 16
          %v665 = vshrl.u32 %v635, 16
          %v666 = vpack.i.b16 %v665, %v664
          %v668 = vcombine.low %v638, %v654
          %v670 = vunpack.c.l.s4 1983009808
          %v671 = vunpack.c.0.s8 %v670
          %v672 = vlaneseq
          %v673 = vshrl.u32 %v672, 7
          %v674 = vsub.s32 %v671, %v673
          %v675 = vrot.slane %v668, %v674
          %v676 = vcombine.low %v646, %v662
          %v678 = vunpack.c.l.s4 1983009808
          %v679 = vunpack.c.0.s8 %v678
          %v680 = vlaneseq
          %v681 = vshrl.u32 %v680, 7
          %v682 = vsub.s32 %v679, %v681
          %v683 = vrot.slane %v676, %v682
          %v684 = vcombine.low %v675, %v683
          %v686 = vunpack.c.l.s4 1934713408
          %v687 = vunpack.c.0.s8 %v686
          %v688 = vlaneseq
          %v689 = vshrl.u32 %v688, 7
          %v690 = vsub.s32 %v687, %v689
          %v691 = vrot.slane %v684, %v690
          %v692 = vcombine.low %v642, %v658
          %v694 = vunpack.c.l.s4 1983009808
          %v695 = vunpack.c.0.s8 %v694
          %v696 = vlaneseq
          %v697 = vshrl.u32 %v696, 7
          %v698 = vsub.s32 %v695, %v697
          %v699 = vrot.slane %v692, %v698
          %v700 = vcombine.low %v650, %v666
          %v702 = vunpack.c.l.s4 1983009808
          %v703 = vunpack.c.0.s8 %v702
          %v704 = vlaneseq
          %v705 = vshrl.u32 %v704, 7
          %v706 = vsub.s32 %v703, %v705
          %v707 = vrot.slane %v700, %v706
          %v708 = vcombine.low %v699, %v707
          %v710 = vunpack.c.l.s4 1934713408
          %v711 = vunpack.c.0.s8 %v710
          %v712 = vlaneseq
          %v713 = vshrl.u32 %v712, 7
          %v714 = vsub.s32 %v711, %v713
          %v715 = vrot.slane %v708, %v714
          %v718 = vpack.i.b16 %v715, %v691
          %v720 = vshrl.u32 %v691, 16
          %v721 = vshrl.u32 %v715, 16
          %v722 = vpack.i.b16 %v721, %v720
          %vm724 = vcmask 125952
          %725 = vst.msk [vmem:[#allocation2] sm:$0xf] %vm724, %v718
          %726 = vst.msk [vmem:[#allocation2 + $0x4] sm:$0xf] %vm724, %v722
          %v727 = vpack.c.bf16 %v578, %v578
          %729 = vrot.lane.b32.xlu0 %v727, 112
          %v730 = vpop.permute.xlu0 %729
          %v732 = vunpack.c.l.s4 1983009808
          %v733 = vunpack.c.0.s8 %v732
          %v734 = vlaneseq
          %v735 = vshrl.u32 %v734, 7
          %v736 = vsub.s32 %v733, %v735
          %v737 = vrot.slane %v727, %v736
          %v738 = vcombine.high %v737, 0
          %v740 = vunpack.c.l.s4 1934713408
          %v741 = vunpack.c.0.s8 %v740
          %v742 = vlaneseq
          %v743 = vshrl.u32 %v742, 7
          %v744 = vsub.s32 %v741, %v743
          %v745 = vrot.slane %v737, %v744
          %v747 = vunpack.c.l.s4 1934713408
          %v748 = vunpack.c.0.s8 %v747
          %v749 = vlaneseq
          %v750 = vshrl.u32 %v749, 7
          %v751 = vsub.s32 %v748, %v750
          %v752 = vrot.slane %v738, %v751
          %v753 = vcombine.high %v745, 0
          %v754 = vcombine.high %v752, 0
          %v757 = vunpack.c.l.s4 1983009808
          %v758 = vunpack.c.0.s8 %v757
          %v759 = vlaneseq
          %v760 = vshrl.u32 %v759, 7
          %v761 = vsub.s32 %v758, %v760
          %v762 = vrot.slane %v730, %v761
          %v763 = vcombine.high %v762, 0
          %v765 = vunpack.c.l.s4 1934713408
          %v766 = vunpack.c.0.s8 %v765
          %v767 = vlaneseq
          %v768 = vshrl.u32 %v767, 7
          %v769 = vsub.s32 %v766, %v768
          %v770 = vrot.slane %v762, %v769
          %v772 = vunpack.c.l.s4 1934713408
          %v773 = vunpack.c.0.s8 %v772
          %v774 = vlaneseq
          %v775 = vshrl.u32 %v774, 7
          %v776 = vsub.s32 %v773, %v775
          %v777 = vrot.slane %v763, %v776
          %v778 = vcombine.high %v770, 0
          %v779 = vcombine.high %v777, 0
          %v782 = vpack.i.b16 %v770, %v745
          %v784 = vshrl.u32 %v745, 16
          %v785 = vshrl.u32 %v770, 16
          %v786 = vpack.i.b16 %v785, %v784
          %v790 = vpack.i.b16 %v778, %v753
          %v792 = vshrl.u32 %v753, 16
          %v793 = vshrl.u32 %v778, 16
          %v794 = vpack.i.b16 %v793, %v792
          %v798 = vpack.i.b16 %v777, %v752
          %v800 = vshrl.u32 %v752, 16
          %v801 = vshrl.u32 %v777, 16
          %v802 = vpack.i.b16 %v801, %v800
          %v806 = vpack.i.b16 %v779, %v754
          %v808 = vshrl.u32 %v754, 16
          %v809 = vshrl.u32 %v779, 16
          %v810 = vpack.i.b16 %v809, %v808
          %v812 = vcombine.low %v782, %v798
          %v814 = vunpack.c.l.s4 1983009808
          %v815 = vunpack.c.0.s8 %v814
          %v816 = vlaneseq
          %v817 = vshrl.u32 %v816, 7
          %v818 = vsub.s32 %v815, %v817
          %v819 = vrot.slane %v812, %v818
          %v820 = vcombine.low %v790, %v806
          %v822 = vunpack.c.l.s4 1983009808
          %v823 = vunpack.c.0.s8 %v822
          %v824 = vlaneseq
          %v825 = vshrl.u32 %v824, 7
          %v826 = vsub.s32 %v823, %v825
          %v827 = vrot.slane %v820, %v826
          %v828 = vcombine.low %v819, %v827
          %v830 = vunpack.c.l.s4 1934713408
          %v831 = vunpack.c.0.s8 %v830
          %v832 = vlaneseq
          %v833 = vshrl.u32 %v832, 7
          %v834 = vsub.s32 %v831, %v833
          %v835 = vrot.slane %v828, %v834
          %v836 = vcombine.low %v786, %v802
          %v838 = vunpack.c.l.s4 1983009808
          %v839 = vunpack.c.0.s8 %v838
          %v840 = vlaneseq
          %v841 = vshrl.u32 %v840, 7
          %v842 = vsub.s32 %v839, %v841
          %v843 = vrot.slane %v836, %v842
          %v844 = vcombine.low %v794, %v810
          %v846 = vunpack.c.l.s4 1983009808
          %v847 = vunpack.c.0.s8 %v846
          %v848 = vlaneseq
          %v849 = vshrl.u32 %v848, 7
          %v850 = vsub.s32 %v847, %v849
          %v851 = vrot.slane %v844, %v850
          %v852 = vcombine.low %v843, %v851
          %v854 = vunpack.c.l.s4 1934713408
          %v855 = vunpack.c.0.s8 %v854
          %v856 = vlaneseq
          %v857 = vshrl.u32 %v856, 7
          %v858 = vsub.s32 %v855, %v857
          %v859 = vrot.slane %v852, %v858
          %v862 = vpack.i.b16 %v859, %v835
          %v864 = vshrl.u32 %v835, 16
          %v865 = vshrl.u32 %v859, 16
          %v866 = vpack.i.b16 %v865, %v864
          %868 = vst.msk [vmem:[#allocation3] sm:$0xf] %vm724, %v862
          %869 = vst.msk [vmem:[#allocation3 + $0x4] sm:$0xf] %vm724, %v866
        $region80: #{tpu_custom_call.1} parent=59 // pred_fallthru
          _
        %s870 = smul.u32 %s34, 8
        %s871 = sshra.s32 %s870, 3
        %s872 = sand.u32 %s870, 7
        %s873 = smul.addr %s871, 4
        %s874 = scalar_lea.vmem %s392, %s873 [#allocation4]
        %v875 = vld [vmem:[%s874] sm:$0xf]
        %v876 = vld [vmem:[#allocation7] sm:$0xf]
        %v877 = vld [vmem:[#allocation7 + $0x4] sm:$0xf]
        %v878 = vld [vmem:[#allocation7 + $0x8] sm:$0xf]
        %v879 = vld [vmem:[#allocation7 + $0xc] sm:$0xf]
        %v880 = vld [vmem:[%s3] sm:$0x1]
        %v882 = vlaneseq
        %v883 = vshrl.u32 %v882, 7
        %v884 = vsub.s32 0, %v883
        %v885 = vrot.slane %v880, %v884
        %v891 = vunpack.c.l.b16 %v876
        %v892 = vunpack.c.l.b16 %v877
        %v893 = vunpack.c.l.b16 %v878
        %v894 = vunpack.c.l.b16 %v879
        %v895 = vpack.c.b16 %v892, %v891
        %v896 = vpack.c.b16 %v894, %v893
        %vm899 = vcmask 261120
        %v901 = vsel %vm899, %v875, 0
        %903 = vmatprep.subr.bf16.mxu0 0
        %904 = vmatpush1.bf16.msra.mxu0 %v895
        %905 = vmatprep.subr.bf16.mxu0 0
        %906 = vmatpush1.bf16.msra.mxu0 %v896
        %907 = vmatprep.subr.bf16.mxu0 0
        %908 = vmatpush1.bf16.msra.mxu0 0
        %909 = vmatprep.subr.bf16.mxu0 0
        %910 = vmatpush1.bf16.msra.mxu0 0
        %911 = vmatprep.subr.bf16.mxu0 0
        %912 = vmatpush1.bf16.msra.mxu0 0
        %913 = vmatprep.subr.bf16.mxu0 0
        %914 = vmatpush1.bf16.msra.mxu0 0
        %915 = vmatprep.subr.bf16.mxu0 0
        %916 = vmatpush1.bf16.msra.mxu0 0
        %917 = vmatprep.subr.bf16.mxu0 0
        %918 = vmatpush1.bf16.msra.mxu0 0
        %919 = vmatprep.subr.bf16.mxu0 0
        %920 = vmatpush1.bf16.msra.mxu0 0
        %921 = vmatprep.subr.bf16.mxu0 0
        %922 = vmatpush1.bf16.msra.mxu0 0
        %923 = vmatprep.subr.bf16.mxu0 0
        %924 = vmatpush1.bf16.msra.mxu0 0
        %925 = vmatprep.subr.bf16.mxu0 0
        %926 = vmatpush1.bf16.msra.mxu0 0
        %927 = vmatprep.subr.bf16.mxu0 0
        %928 = vmatpush1.bf16.msra.mxu0 0
        %929 = vmatprep.subr.bf16.mxu0 0
        %930 = vmatpush1.bf16.msra.mxu0 0
        %931 = vmatprep.subr.bf16.mxu0 0
        %932 = vmatpush1.bf16.msra.mxu0 0
        %933 = vmatprep.subr.bf16.mxu0 0
        %934 = vmatpush1.bf16.msra.mxu0 0
        %935 = vmatprep.mubr.bf16.mxu0 0
        %936 = vmatmul.mubr.bf16.gmra.mrb[0].mxu0 %v901
        %v937 = vpop.f32.mrb[0].mxu0
        %v938 = vadd.f32 %v885, %v937
        %v939 = vpop.f32.mrb[0].mxu0
        %v940 = vpop.f32.mrb[0].mxu0
        %v941 = vpop.f32.mrb[0].mxu0
        %942 = vdwg.mxu0
        %v943 = vmul.f32 %v938, 0.25
        %v944 = vpack.c.bf16 %v943, %v943
        %946 = vrot.lane.b32.xlu0 %v944, 112
        %v947 = vpop.permute.xlu0 %946
        %v949 = vunpack.c.l.s4 1983009808
        %v950 = vunpack.c.0.s8 %v949
        %v951 = vlaneseq
        %v952 = vshrl.u32 %v951, 7
        %v953 = vsub.s32 %v950, %v952
        %v954 = vrot.slane %v944, %v953
        %v955 = vcombine.high %v954, 0
        %v957 = vunpack.c.l.s4 1934713408
        %v958 = vunpack.c.0.s8 %v957
        %v959 = vlaneseq
        %v960 = vshrl.u32 %v959, 7
        %v961 = vsub.s32 %v958, %v960
        %v962 = vrot.slane %v954, %v961
        %v964 = vunpack.c.l.s4 1934713408
        %v965 = vunpack.c.0.s8 %v964
        %v966 = vlaneseq
        %v967 = vshrl.u32 %v966, 7
        %v968 = vsub.s32 %v965, %v967
        %v969 = vrot.slane %v955, %v968
        %v970 = vcombine.high %v962, 0
        %v971 = vcombine.high %v969, 0
        %v974 = vunpack.c.l.s4 1983009808
        %v975 = vunpack.c.0.s8 %v974
        %v976 = vlaneseq
        %v977 = vshrl.u32 %v976, 7
        %v978 = vsub.s32 %v975, %v977
        %v979 = vrot.slane %v947, %v978
        %v980 = vcombine.high %v979, 0
        %v982 = vunpack.c.l.s4 1934713408
        %v983 = vunpack.c.0.s8 %v982
        %v984 = vlaneseq
        %v985 = vshrl.u32 %v984, 7
        %v986 = vsub.s32 %v983, %v985
        %v987 = vrot.slane %v979, %v986
        %v989 = vunpack.c.l.s4 1934713408
        %v990 = vunpack.c.0.s8 %v989
        %v991 = vlaneseq
        %v992 = vshrl.u32 %v991, 7
        %v993 = vsub.s32 %v990, %v992
        %v994 = vrot.slane %v980, %v993
        %v995 = vcombine.high %v987, 0
        %v996 = vcombine.high %v994, 0
        %v999 = vpack.i.b16 %v987, %v962
        %v1001 = vshrl.u32 %v962, 16
        %v1002 = vshrl.u32 %v987, 16
        %v1003 = vpack.i.b16 %v1002, %v1001
        %v1007 = vpack.i.b16 %v995, %v970
        %v1009 = vshrl.u32 %v970, 16
        %v1010 = vshrl.u32 %v995, 16
        %v1011 = vpack.i.b16 %v1010, %v1009
        %v1015 = vpack.i.b16 %v994, %v969
        %v1017 = vshrl.u32 %v969, 16
        %v1018 = vshrl.u32 %v994, 16
        %v1019 = vpack.i.b16 %v1018, %v1017
        %v1023 = vpack.i.b16 %v996, %v971
        %v1025 = vshrl.u32 %v971, 16
        %v1026 = vshrl.u32 %v996, 16
        %v1027 = vpack.i.b16 %v1026, %v1025
        %v1029 = vcombine.low %v999, %v1015
        %v1031 = vunpack.c.l.s4 1983009808
        %v1032 = vunpack.c.0.s8 %v1031
        %v1033 = vlaneseq
        %v1034 = vshrl.u32 %v1033, 7
        %v1035 = vsub.s32 %v1032, %v1034
        %v1036 = vrot.slane %v1029, %v1035
        %v1037 = vcombine.low %v1007, %v1023
        %v1039 = vunpack.c.l.s4 1983009808
        %v1040 = vunpack.c.0.s8 %v1039
        %v1041 = vlaneseq
        %v1042 = vshrl.u32 %v1041, 7
        %v1043 = vsub.s32 %v1040, %v1042
        %v1044 = vrot.slane %v1037, %v1043
        %v1045 = vcombine.low %v1036, %v1044
        %v1047 = vunpack.c.l.s4 1934713408
        %v1048 = vunpack.c.0.s8 %v1047
        %v1049 = vlaneseq
        %v1050 = vshrl.u32 %v1049, 7
        %v1051 = vsub.s32 %v1048, %v1050
        %v1052 = vrot.slane %v1045, %v1051
        %v1053 = vcombine.low %v1003, %v1019
        %v1055 = vunpack.c.l.s4 1983009808
        %v1056 = vunpack.c.0.s8 %v1055
        %v1057 = vlaneseq
        %v1058 = vshrl.u32 %v1057, 7
        %v1059 = vsub.s32 %v1056, %v1058
        %v1060 = vrot.slane %v1053, %v1059
        %v1061 = vcombine.low %v1011, %v1027
        %v1063 = vunpack.c.l.s4 1983009808
        %v1064 = vunpack.c.0.s8 %v1063
        %v1065 = vlaneseq
        %v1066 = vshrl.u32 %v1065, 7
        %v1067 = vsub.s32 %v1064, %v1066
        %v1068 = vrot.slane %v1061, %v1067
        %v1069 = vcombine.low %v1060, %v1068
        %v1071 = vunpack.c.l.s4 1934713408
        %v1072 = vunpack.c.0.s8 %v1071
        %v1073 = vlaneseq
        %v1074 = vshrl.u32 %v1073, 7
        %v1075 = vsub.s32 %v1072, %v1074
        %v1076 = vrot.slane %v1069, %v1075
        %v1079 = vpack.i.b16 %v1076, %v1052
        %v1080 = vshrl.u32 %v1052, 16
        %v1081 = vshrl.u32 %v1076, 16
        %v1082 = vpack.i.b16 %v1081, %v1080
        %v1083 = vld [vmem:[#allocation2] sm:$0xf]
        %v1084 = vld [vmem:[#allocation2 + $0x4] sm:$0xf]
        %v1085 = vld [vmem:[#allocation3] sm:$0xf]
        %v1086 = vld [vmem:[#allocation3 + $0x4] sm:$0xf]
        %vm1087 = vcmask 130048
        %v1089 = vsel %vm1087, %v1079, 0
        %v1092 = vsel %vm1087, %v1083, 0
        %1094 = vmatprep.subr.bf16.mxu0 0
        %1095 = vmatpush1.bf16.xpose.msra.mxu0 %v1092
        %1096 = vmatprep.subr.bf16.mxu0 0
        %1097 = vmatpush1.bf16.xpose.msra.mxu0 0
        %1098 = vmatprep.subr.bf16.mxu0 0
        %1099 = vmatpush1.bf16.xpose.msra.mxu0 0
        %1100 = vmatprep.subr.bf16.mxu0 0
        %1101 = vmatpush1.bf16.xpose.msra.mxu0 0
        %1102 = vmatprep.subr.bf16.mxu0 0
        %1103 = vmatpush1.bf16.xpose.msra.mxu0 0
        %1104 = vmatprep.subr.bf16.mxu0 0
        %1105 = vmatpush1.bf16.xpose.msra.mxu0 0
        %1106 = vmatprep.subr.bf16.mxu0 0
        %1107 = vmatpush1.bf16.xpose.msra.mxu0 0
        %1108 = vmatprep.subr.bf16.mxu0 0
        %1109 = vmatpush1.bf16.xpose.msra.mxu0 0
        %1110 = vmatprep.subr.bf16.mxu0 0
        %1111 = vmatpush1.bf16.xpose.msra.mxu0 0
        %1112 = vmatprep.subr.bf16.mxu0 0
        %1113 = vmatpush1.bf16.xpose.msra.mxu0 0
        %1114 = vmatprep.subr.bf16.mxu0 0
        %1115 = vmatpush1.bf16.xpose.msra.mxu0 0
        %1116 = vmatprep.subr.bf16.mxu0 0
        %1117 = vmatpush1.bf16.xpose.msra.mxu0 0
        %1118 = vmatprep.subr.bf16.mxu0 0
        %1119 = vmatpush1.bf16.xpose.msra.mxu0 0
        %1120 = vmatprep.subr.bf16.mxu0 0
        %1121 = vmatpush1.bf16.xpose.msra.mxu0 0
        %1122 = vmatprep.subr.bf16.mxu0 0
        %1123 = vmatpush1.bf16.xpose.msra.mxu0 0
        %1124 = vmatprep.subr.bf16.mxu0 0
        %1125 = vmatpush1.bf16.xpose.msra.mxu0 0
        %1126 = vmatprep.mubr.bf16.mxu0 0
        %1127 = vmatmul.mubr.bf16.gmra.mrb[0].mxu0 %v1089
        %v1128 = vpop.f32.mrb[0].mxu0
        %v1129 = vadd.f32 0.0, %v1128
        %v1130 = vpop.f32.mrb[0].mxu0
        %v1131 = vpop.f32.mrb[0].mxu0
        %v1132 = vpop.f32.mrb[0].mxu0
        %1133 = vdwg.mxu0
        %v1135 = vsel %vm1087, %v1082, 0
        %v1138 = vsel %vm1087, %v1084, 0
        %1140 = vmatprep.subr.bf16.mxu0 0
        %1141 = vmatpush1.bf16.xpose.msra.mxu0 %v1138
        %1142 = vmatprep.subr.bf16.mxu0 0
        %1143 = vmatpush1.bf16.xpose.msra.mxu0 0
        %1144 = vmatprep.subr.bf16.mxu0 0
        %1145 = vmatpush1.bf16.xpose.msra.mxu0 0
        %1146 = vmatprep.subr.bf16.mxu0 0
        %1147 = vmatpush1.bf16.xpose.msra.mxu0 0
        %1148 = vmatprep.subr.bf16.mxu0 0
        %1149 = vmatpush1.bf16.xpose.msra.mxu0 0
        %1150 = vmatprep.subr.bf16.mxu0 0
        %1151 = vmatpush1.bf16.xpose.msra.mxu0 0
        %1152 = vmatprep.subr.bf16.mxu0 0
        %1153 = vmatpush1.bf16.xpose.msra.mxu0 0
        %1154 = vmatprep.subr.bf16.mxu0 0
        %1155 = vmatpush1.bf16.xpose.msra.mxu0 0
        %1156 = vmatprep.subr.bf16.mxu0 0
        %1157 = vmatpush1.bf16.xpose.msra.mxu0 0
        %1158 = vmatprep.subr.bf16.mxu0 0
        %1159 = vmatpush1.bf16.xpose.msra.mxu0 0
        %1160 = vmatprep.subr.bf16.mxu0 0
        %1161 = vmatpush1.bf16.xpose.msra.mxu0 0
        %1162 = vmatprep.subr.bf16.mxu0 0
        %1163 = vmatpush1.bf16.xpose.msra.mxu0 0
        %1164 = vmatprep.subr.bf16.mxu0 0
        %1165 = vmatpush1.bf16.xpose.msra.mxu0 0
        %1166 = vmatprep.subr.bf16.mxu0 0
        %1167 = vmatpush1.bf16.xpose.msra.mxu0 0
        %1168 = vmatprep.subr.bf16.mxu0 0
        %1169 = vmatpush1.bf16.xpose.msra.mxu0 0
        %1170 = vmatprep.subr.bf16.mxu0 0
        %1171 = vmatpush1.bf16.xpose.msra.mxu0 0
        %1172 = vmatprep.mubr.bf16.mxu0 0
        %1173 = vmatmul.mubr.bf16.gmra.mrb[0].mxu0 %v1135
        %v1174 = vpop.f32.mrb[0].mxu0
        %v1175 = vadd.f32 0.0, %v1174
        %v1176 = vpop.f32.mrb[0].mxu0
        %v1177 = vpop.f32.mrb[0].mxu0
        %v1178 = vpop.f32.mrb[0].mxu0
        %1179 = vdwg.mxu0
        %v1180 = vld [vmem:[%s446] sm:$0x1]
        %v1182 = vlaneseq
        %v1183 = vshrl.u32 %v1182, 7
        %v1184 = vsub.s32 0, %v1183
        %v1185 = vrot.slane %v1180, %v1184
        %v1187 = vsub.f32 %v1129, %v1185
        %v1188 = vsub.f32 %v1175, %v1185
        %vm1189 = vcmask 64512
        %v1190 = vsel %vm1189, %v1187, -inf
        %1191 = vmax.xlane.f32.xlu0 %v1190
        %v1192 = vpop.xlane.xlu0 %1191
        %v1193 = vsel %vm1189, %v1188, -inf
        %1194 = vmax.xlane.f32.xlu0 %v1193
        %v1195 = vpop.xlane.xlu0 %1194
        %v1196 = vsub.f32 %v1187, %v1192
        %v1197 = vsub.f32 %v1188, %v1195
        %v1198 = vmul.f32 %v1196, 1.442695
        %v1199 = vpow.pop %v1198
        %v1200 = vmul.f32 %v1197, 1.442695
        %v1201 = vpow.pop %v1200
        %v1202 = vsel %vm1189, %v1199, 0.0
        %1203 = vadd.xlane.f32.xlu0 %v1202
        %v1204 = vpop.xlane.xlu0 %1203
        %v1205 = vsel %vm1189, %v1201, 0.0
        %1206 = vadd.xlane.f32.xlu0 %v1205
        %v1207 = vpop.xlane.xlu0 %1206
        %v1208 = vrcp.pop %v1204
        %v1209 = vrcp.pop %v1207
        %v1210 = vmul.f32 %v1199, %v1208
        %v1211 = vmul.f32 %v1201, %v1209
        %v1212 = vpack.c.bf16 %v1210, %v1210
        %v1213 = vpack.c.bf16 %v1211, %v1211
        %v1215 = vsel %vm1189, %v1212, 0
        %vm1217 = vcmask 1043456
        %v1219 = vsel %vm1217, %v1085, 0
        %1221 = vmatprep.subr.bf16.mxu0 0
        %1222 = vmatpush1.bf16.msra.mxu0 %v1219
        %1223 = vmatprep.subr.bf16.mxu0 0
        %1224 = vmatpush1.bf16.msra.mxu0 0
        %1225 = vmatprep.subr.bf16.mxu0 0
        %1226 = vmatpush1.bf16.msra.mxu0 0
        %1227 = vmatprep.subr.bf16.mxu0 0
        %1228 = vmatpush1.bf16.msra.mxu0 0
        %1229 = vmatprep.subr.bf16.mxu0 0
        %1230 = vmatpush1.bf16.msra.mxu0 0
        %1231 = vmatprep.subr.bf16.mxu0 0
        %1232 = vmatpush1.bf16.msra.mxu0 0
        %1233 = vmatprep.subr.bf16.mxu0 0
        %1234 = vmatpush1.bf16.msra.mxu0 0
        %1235 = vmatprep.subr.bf16.mxu0 0
        %1236 = vmatpush1.bf16.msra.mxu0 0
        %1237 = vmatprep.subr.bf16.mxu0 0
        %1238 = vmatpush1.bf16.msra.mxu0 0
        %1239 = vmatprep.subr.bf16.mxu0 0
        %1240 = vmatpush1.bf16.msra.mxu0 0
        %1241 = vmatprep.subr.bf16.mxu0 0
        %1242 = vmatpush1.bf16.msra.mxu0 0
        %1243 = vmatprep.subr.bf16.mxu0 0
        %1244 = vmatpush1.bf16.msra.mxu0 0
        %1245 = vmatprep.subr.bf16.mxu0 0
        %1246 = vmatpush1.bf16.msra.mxu0 0
        %1247 = vmatprep.subr.bf16.mxu0 0
        %1248 = vmatpush1.bf16.msra.mxu0 0
        %1249 = vmatprep.subr.bf16.mxu0 0
        %1250 = vmatpush1.bf16.msra.mxu0 0
        %1251 = vmatprep.subr.bf16.mxu0 0
        %1252 = vmatpush1.bf16.msra.mxu0 0
        %1253 = vmatprep.mubr.bf16.mxu0 0
        %1254 = vmatmul.mubr.bf16.gmra.mrb[0].mxu0 %v1215
        %v1255 = vpop.f32.mrb[0].mxu0
        %v1256 = vadd.f32 0.0, %v1255
        %v1257 = vpop.f32.mrb[0].mxu0
        %v1258 = vpop.f32.mrb[0].mxu0
        %v1259 = vpop.f32.mrb[0].mxu0
        %1260 = vdwg.mxu0
        %v1262 = vsel %vm1189, %v1213, 0
        %v1265 = vsel %vm1217, %v1086, 0
        %1267 = vmatprep.subr.bf16.mxu0 0
        %1268 = vmatpush1.bf16.msra.mxu0 %v1265
        %1269 = vmatprep.subr.bf16.mxu0 0
        %1270 = vmatpush1.bf16.msra.mxu0 0
        %1271 = vmatprep.subr.bf16.mxu0 0
        %1272 = vmatpush1.bf16.msra.mxu0 0
        %1273 = vmatprep.subr.bf16.mxu0 0
        %1274 = vmatpush1.bf16.msra.mxu0 0
        %1275 = vmatprep.subr.bf16.mxu0 0
        %1276 = vmatpush1.bf16.msra.mxu0 0
        %1277 = vmatprep.subr.bf16.mxu0 0
        %1278 = vmatpush1.bf16.msra.mxu0 0
        %1279 = vmatprep.subr.bf16.mxu0 0
        %1280 = vmatpush1.bf16.msra.mxu0 0
        %1281 = vmatprep.subr.bf16.mxu0 0
        %1282 = vmatpush1.bf16.msra.mxu0 0
        %1283 = vmatprep.subr.bf16.mxu0 0
        %1284 = vmatpush1.bf16.msra.mxu0 0
        %1285 = vmatprep.subr.bf16.mxu0 0
        %1286 = vmatpush1.bf16.msra.mxu0 0
        %1287 = vmatprep.subr.bf16.mxu0 0
        %1288 = vmatpush1.bf16.msra.mxu0 0
        %1289 = vmatprep.subr.bf16.mxu0 0
        %1290 = vmatpush1.bf16.msra.mxu0 0
        %1291 = vmatprep.subr.bf16.mxu0 0
        %1292 = vmatpush1.bf16.msra.mxu0 0
        %1293 = vmatprep.subr.bf16.mxu0 0
        %1294 = vmatpush1.bf16.msra.mxu0 0
        %1295 = vmatprep.subr.bf16.mxu0 0
        %1296 = vmatpush1.bf16.msra.mxu0 0
        %1297 = vmatprep.subr.bf16.mxu0 0
        %1298 = vmatpush1.bf16.msra.mxu0 0
        %1299 = vmatprep.mubr.bf16.mxu0 0
        %1300 = vmatmul.mubr.bf16.gmra.mrb[0].mxu0 %v1262
        %v1301 = vpop.f32.mrb[0].mxu0
        %v1302 = vadd.f32 0.0, %v1301
        %v1303 = vpop.f32.mrb[0].mxu0
        %v1304 = vpop.f32.mrb[0].mxu0
        %v1305 = vpop.f32.mrb[0].mxu0
        %1306 = vdwg.mxu0
        %v1307 = vpack.c.bf16 %v1256, %v1256
        %v1309 = vunpack.c.l.s4 1983009808
        %v1310 = vunpack.c.0.s8 %v1309
        %v1311 = vlaneseq
        %v1312 = vshrl.u32 %v1311, 7
        %v1313 = vsub.s32 %v1310, %v1312
        %v1314 = vrot.slane %v1307, %v1313
        %v1315 = vcombine.high %v1314, 0
        %v1317 = vunpack.c.l.s4 1934713408
        %v1318 = vunpack.c.0.s8 %v1317
        %v1319 = vlaneseq
        %v1320 = vshrl.u32 %v1319, 7
        %v1321 = vsub.s32 %v1318, %v1320
        %v1322 = vrot.slane %v1314, %v1321
        %v1324 = vunpack.c.l.s4 1934713408
        %v1325 = vunpack.c.0.s8 %v1324
        %v1326 = vlaneseq
        %v1327 = vshrl.u32 %v1326, 7
        %v1328 = vsub.s32 %v1325, %v1327
        %v1329 = vrot.slane %v1315, %v1328
        %v1330 = vcombine.high %v1322, 0
        %v1331 = vcombine.high %v1329, 0
        %v1332 = vpack.c.bf16 %v1302, %v1302
        %v1334 = vunpack.c.l.s4 1983009808
        %v1335 = vunpack.c.0.s8 %v1334
        %v1336 = vlaneseq
        %v1337 = vshrl.u32 %v1336, 7
        %v1338 = vsub.s32 %v1335, %v1337
        %v1339 = vrot.slane %v1332, %v1338
        %v1340 = vcombine.high %v1339, 0
        %v1342 = vunpack.c.l.s4 1934713408
        %v1343 = vunpack.c.0.s8 %v1342
        %v1344 = vlaneseq
        %v1345 = vshrl.u32 %v1344, 7
        %v1346 = vsub.s32 %v1343, %v1345
        %v1347 = vrot.slane %v1339, %v1346
        %v1349 = vunpack.c.l.s4 1934713408
        %v1350 = vunpack.c.0.s8 %v1349
        %v1351 = vlaneseq
        %v1352 = vshrl.u32 %v1351, 7
        %v1353 = vsub.s32 %v1350, %v1352
        %v1354 = vrot.slane %v1340, %v1353
        %v1355 = vcombine.high %v1347, 0
        %v1356 = vcombine.high %v1354, 0
        %v1359 = vpack.i.b16 %v1347, %v1322
        %v1361 = vshrl.u32 %v1322, 16
        %v1362 = vshrl.u32 %v1347, 16
        %v1363 = vpack.i.b16 %v1362, %v1361
        %v1367 = vpack.i.b16 %v1355, %v1330
        %v1369 = vshrl.u32 %v1330, 16
        %v1370 = vshrl.u32 %v1355, 16
        %v1371 = vpack.i.b16 %v1370, %v1369
        %v1375 = vpack.i.b16 %v1354, %v1329
        %v1377 = vshrl.u32 %v1329, 16
        %v1378 = vshrl.u32 %v1354, 16
        %v1379 = vpack.i.b16 %v1378, %v1377
        %v1383 = vpack.i.b16 %v1356, %v1331
        %v1385 = vshrl.u32 %v1331, 16
        %v1386 = vshrl.u32 %v1356, 16
        %v1387 = vpack.i.b16 %v1386, %v1385
        %v1389 = vcombine.low %v1359, %v1375
        %v1391 = vunpack.c.l.s4 1983009808
        %v1392 = vunpack.c.0.s8 %v1391
        %v1393 = vlaneseq
        %v1394 = vshrl.u32 %v1393, 7
        %v1395 = vsub.s32 %v1392, %v1394
        %v1396 = vrot.slane %v1389, %v1395
        %v1397 = vcombine.low %v1367, %v1383
        %v1399 = vunpack.c.l.s4 1983009808
        %v1400 = vunpack.c.0.s8 %v1399
        %v1401 = vlaneseq
        %v1402 = vshrl.u32 %v1401, 7
        %v1403 = vsub.s32 %v1400, %v1402
        %v1404 = vrot.slane %v1397, %v1403
        %v1405 = vcombine.low %v1396, %v1404
        %v1407 = vunpack.c.l.s4 1934713408
        %v1408 = vunpack.c.0.s8 %v1407
        %v1409 = vlaneseq
        %v1410 = vshrl.u32 %v1409, 7
        %v1411 = vsub.s32 %v1408, %v1410
        %v1412 = vrot.slane %v1405, %v1411
        %v1413 = vcombine.low %v1363, %v1379
        %v1415 = vunpack.c.l.s4 1983009808
        %v1416 = vunpack.c.0.s8 %v1415
        %v1417 = vlaneseq
        %v1418 = vshrl.u32 %v1417, 7
        %v1419 = vsub.s32 %v1416, %v1418
        %v1420 = vrot.slane %v1413, %v1419
        %v1421 = vcombine.low %v1371, %v1387
        %v1423 = vunpack.c.l.s4 1983009808
        %v1424 = vunpack.c.0.s8 %v1423
        %v1425 = vlaneseq
        %v1426 = vshrl.u32 %v1425, 7
        %v1427 = vsub.s32 %v1424, %v1426
        %v1428 = vrot.slane %v1421, %v1427
        %v1429 = vcombine.low %v1420, %v1428
        %v1431 = vunpack.c.l.s4 1934713408
        %v1432 = vunpack.c.0.s8 %v1431
        %v1433 = vlaneseq
        %v1434 = vshrl.u32 %v1433, 7
        %v1435 = vsub.s32 %v1432, %v1434
        %v1436 = vrot.slane %v1429, %v1435
        %v1439 = vpack.i.b16 %v1436, %v1412
        %v1440 = vshrl.u32 %v1412, 16
        %v1441 = vshrl.u32 %v1436, 16
        %v1442 = vpack.i.b16 %v1441, %v1440
        %1443 = vrot.lane.b32.xlu0 %v1442, 16
        %v1444 = vpop.permute.xlu0 %1443
        %v1447 = vsel %vm1087, %v1439, %v1444
        %v1448 = vld [vmem:[#allocation10] sm:$0xf]
        %v1449 = vld [vmem:[#allocation10 + $0x4] sm:$0xf]
        %v1450 = vld [vmem:[#allocation10 + $0x8] sm:$0xf]
        %v1451 = vld [vmem:[#allocation10 + $0xc] sm:$0xf]
        %v1452 = vld [vmem:[%s9] sm:$0x1]
        %v1454 = vlaneseq
        %v1455 = vshrl.u32 %v1454, 7
        %v1456 = vsub.s32 0, %v1455
        %v1457 = vrot.slane %v1452, %v1456
        %v1463 = vunpack.c.l.b16 %v1448
        %v1464 = vunpack.c.l.b16 %v1449
        %v1465 = vunpack.c.l.b16 %v1450
        %v1466 = vunpack.c.l.b16 %v1451
        %v1467 = vpack.c.b16 %v1464, %v1463
        %v1468 = vpack.c.b16 %v1466, %v1465
        %v1471 = vsel %vm899, %v1447, 0
        %1473 = vmatprep.subr.bf16.mxu0 0
        %1474 = vmatpush1.bf16.msra.mxu0 %v1467
        %1475 = vmatprep.subr.bf16.mxu0 0
        %1476 = vmatpush1.bf16.msra.mxu0 %v1468
        %1477 = vmatprep.subr.bf16.mxu0 0
        %1478 = vmatpush1.bf16.msra.mxu0 0
        %1479 = vmatprep.subr.bf16.mxu0 0
        %1480 = vmatpush1.bf16.msra.mxu0 0
        %1481 = vmatprep.subr.bf16.mxu0 0
        %1482 = vmatpush1.bf16.msra.mxu0 0
        %1483 = vmatprep.subr.bf16.mxu0 0
        %1484 = vmatpush1.bf16.msra.mxu0 0
        %1485 = vmatprep.subr.bf16.mxu0 0
        %1486 = vmatpush1.bf16.msra.mxu0 0
        %1487 = vmatprep.subr.bf16.mxu0 0
        %1488 = vmatpush1.bf16.msra.mxu0 0
        %1489 = vmatprep.subr.bf16.mxu0 0
        %1490 = vmatpush1.bf16.msra.mxu0 0
        %1491 = vmatprep.subr.bf16.mxu0 0
        %1492 = vmatpush1.bf16.msra.mxu0 0
        %1493 = vmatprep.subr.bf16.mxu0 0
        %1494 = vmatpush1.bf16.msra.mxu0 0
        %1495 = vmatprep.subr.bf16.mxu0 0
        %1496 = vmatpush1.bf16.msra.mxu0 0
        %1497 = vmatprep.subr.bf16.mxu0 0
        %1498 = vmatpush1.bf16.msra.mxu0 0
        %1499 = vmatprep.subr.bf16.mxu0 0
        %1500 = vmatpush1.bf16.msra.mxu0 0
        %1501 = vmatprep.subr.bf16.mxu0 0
        %1502 = vmatpush1.bf16.msra.mxu0 0
        %1503 = vmatprep.subr.bf16.mxu0 0
        %1504 = vmatpush1.bf16.msra.mxu0 0
        %1505 = vmatprep.mubr.bf16.mxu0 0
        %1506 = vmatmul.mubr.bf16.gmra.mrb[0].mxu0 %v1471
        %v1507 = vpop.f32.mrb[0].mxu0
        %v1508 = vadd.f32 %v1457, %v1507
        %v1509 = vpop.f32.mrb[0].mxu0
        %v1510 = vpop.f32.mrb[0].mxu0
        %v1511 = vpop.f32.mrb[0].mxu0
        %1512 = vdwg.mxu0
        %1513 = vst.msk [vmem:[%s443] sm:$0xff] %vm899, %v1508
        %s1514 = sand.u32 %s271, 1
        %s1515 = scalar_lea.sflag [#allocation6], %s1514
        %s1516 = sand.u32 %s271, 1
        %s1517 = smul.addr %s1516, 8
        %s1518 = scalar_lea.vmem [#allocation12], %s1517
        // Predicated region
        $region81: #{tpu_custom_call.1} parent=59 // pred_check
          %p1519 = pneg %p281
        $region82: #{tpu_custom_call.1} parent=59 // pred_check_branch
          %1521 = sbr.rel (%p1519) target = $region84
        $region83: #{tpu_custom_call.1} parent=59 // pred_region
          %s1523 = ssub.s32 128, 128
          %1524 = vsyncadd %s1515, %s1523
          %s1525 = sadd.s32 %s34, %s33
          %s1526 = smul.addr %s1525, 128
          %s1527 = scalar_lea.hbm %s10, %s1526
          %s1529 = sshll.u32 %s1518, 4
          %s1530 = int_to_ptr.vmem [resolvable:$true] %s1529
          %1532 = dma.vmem_to_hbm [thread:$0]  %s1530, 128, %s1527, %s1515
        $region84: #{tpu_custom_call.1} parent=59 // pred_fallthru
          _
      $region60: #{tpu_custom_call.1} parent=5 // pred_fallthru
        _
      %p1533 = scmp.le.s32.totalorder 2, %s24
      // Predicated region
      $region85: #{tpu_custom_call.1} parent=5 // pred_check
        %p1534 = pneg %p1533
      $region86: #{tpu_custom_call.1} parent=5 // pred_check_branch
        %1536 = sbr.rel (%p1534) target = $region88
      $region87: #{tpu_custom_call.1} parent=5 // pred_region
        %s1537 = ssub.s32 %s24, 2
        // Predicated region
        $region89: #{tpu_custom_call.1} parent=87 // pred_check
          %p1538 = pneg %p287
        $region90: #{tpu_custom_call.1} parent=87 // pred_check_branch
          %1540 = sbr.rel (%p1538) target = $region92
        $region91: #{tpu_custom_call.1} parent=87 // pred_region
          %s1541 = sand.u32 %s272, 1
          %s1542 = scalar_lea.sflag [#allocation6], %s1541
          %s1543 = sand.u32 %s272, 1
          %s1544 = smul.addr %s1543, 8
          %s1545 = scalar_lea.vmem [#allocation12], %s1544
          %1546 = dma.done %s1542, 128
        $region92: #{tpu_custom_call.1} parent=87 // pred_fallthru
          _
      $region88: #{tpu_custom_call.1} parent=5 // pred_fallthru
        _
    $region6: #{tpu_custom_call.1} parent=1 // loop_footer
      %s28 = sadd.s32 1, %s24
    $region7: #{tpu_custom_call.1} parent=1 // loop_footer_branch
      %23 = sbr.rel target = $region3
    $region8: #{tpu_custom_call.1} parent=1 // loop_exit
      _
    %1547 = vsyncpa [#allocation5], 1
    %s1548 = scalar_lea.sflag [#allocation5], 1
    %1549 = vsyncpa %s1548, 1
    %1550 = vsyncpa [#allocation8], 1
    %1551 = vsyncpa [#allocation11], 1
    %1552 = vsyncpa [#allocation6], 1
    %s1553 = scalar_lea.sflag [#allocation6], 1
    %1554 = vsyncpa %s1553, 1

</llo_original>
